<compile_context>
chip_gen: v7x
topology: tpu7x:2x2x1
jax: 0.10.0
libtpu: 0.0.40
codegen_flags: <defaults>
</compile_context>

<pallas_src>
import functools

import numpy as np
import jax
import jax.numpy as jnp
from jax.experimental import pallas as pl
from jax.experimental.pallas import tpu as pltpu

KSIZE = 31
SIGMA = 4
PAD = (KSIZE - 1) // 2

LANE = 128
# ~2 MiB streamed block: with double-buffering (2*x + 2*out + 2*s) the
# resident set is ~<=9 MiB — inside v5e's 16 MiB default scoped VMEM, v6e's
# 32 MiB default, and far under v7x's 64 MiB physical VMEM.
TARGET_BLOCK_BYTES = 2 << 20


def _cdiv(a, b):
    return -(-a // b)


def make_gaussian_window(n=16, sigma=3):
    """Same as the PyTorch reference make_guassian_window (used for the ref check)."""
    half = int((n - 1) / 2)
    a = np.asarray([[x ** 2 + y ** 2 for x in range(-half, half + 1)]
                    for y in range(-half, half + 1)])
    return np.exp(-a / (2 * sigma ** 2))


@functools.lru_cache(maxsize=None)
def _sep_conv_mats(H, W, ksize=KSIZE, sigma=SIGMA):
    """Separable-Gaussian band matrices with the conv zero-padding folded in.

    conv2d(attn, gk, padding=15) == Rmat @ attn @ Cmat, where
      Rmat[i, r] = g1[r - i + 15] for |r - i| <= 15   (shape (H, H))
      Cmat[c, j] = g1[c - j + 15] for |c - j| <= 15   (shape (W, W))
    and gk[ki, kj] = g1[ki] * g1[kj].  Built once per (H, W), cached on device.
    """
    half = (ksize - 1) // 2
    g1 = np.exp(-(np.arange(ksize, dtype=np.float64) - half) ** 2
                / (2.0 * sigma ** 2))

    def band(n):
        idx = np.arange(n)
        d = idx[None, :] - idx[:, None]          # d[i, r] = r - i
        mask = np.abs(d) <= half
        out = np.zeros((n, n), np.float64)
        out[mask] = g1[(d + half)[mask]]
        return out.astype(np.float32)            # symmetric band matrix

    return jnp.asarray(band(H)), jnp.asarray(band(W))


def _soft_attn_kernel(attn_ref, rmat_ref, cmat_ref, s_ref):
    """Per block of `bn` batches: separable 31x31 Gaussian conv (2 small MXU
    matmuls at HIGHEST precision), min-max normalization, elementwise max with
    the raw attention map.  The raw-dtype attention is cast in-kernel."""
    rmat = rmat_ref[...]
    cmat = cmat_ref[...]
    bn = attn_ref.shape[0]
    for i in range(bn):                       # bn is a small static constant
        a = attn_ref[i, 0].astype(jnp.float32)                  # (H, W)
        t = jnp.dot(rmat, a, precision=jax.lax.Precision.HIGHEST,
                    preferred_element_type=jnp.float32)
        conv = jnp.dot(t, cmat, precision=jax.lax.Precision.HIGHEST,
                       preferred_element_type=jnp.float32)
        mx = jnp.max(conv)
        mn = jnp.min(conv)
        soft = (conv - mn) * (1.0 / (mx - mn + 1e-8))
        s_ref[i] = jnp.maximum(soft, a).astype(s_ref.dtype)


def _apply_attn_kernel(s_ref, x_ref, o_ref):
    """Lane-dense broadcast multiply: (1, ct, hwt) * (1, 1, hwt)."""
    o_ref[...] = (x_ref[...] * s_ref[...]).astype(o_ref.dtype)


def _sublane_pack(elem_bytes):
    """Packed-sublane multiple: 8 for f32, 16 for bf16, 32 for int8/fp8."""
    return max(8, 32 // max(1, elem_bytes))


def _pick_apply_tiles(N, C, HW, elem_bytes, target=TARGET_BLOCK_BYTES):
    """(channel_tile, hw_tile) for the streaming x*s kernel.

    Channel tiles are multiples of the sublane pack (or full C); HW tiles are
    multiples of 128 lanes (or full HW) so stores stay unmasked.  Both C and
    HW use cdiv grids with padded last blocks, so no divisibility games."""
    pack = _sublane_pack(elem_bytes)
    if C * HW * elem_bytes <= target:
        ct, hwt = C, HW
    else:
        ct_max = (target // (HW * elem_bytes)) // pack * pack
        if ct_max >= pack:
            ct, hwt = min(C, ct_max), HW
        else:
            # HW alone is too big even for a pack-thin channel tile: tile HW.
            ct = min(C, pack)
            hwt = (target // (ct * elem_bytes)) // LANE * LANE
            hwt = max(LANE, min(hwt, HW))

    # Guarantee >=2 grid steps so both v7x TensorCores get work and the
    # pipeline has prefetch/compute overlap even for N==1 single-block inputs.
    if N * _cdiv(C, ct) * _cdiv(HW, hwt) < 2:
        if hwt >= 2 * LANE:
            hwt = max(LANE, ((hwt + 1) // 2) // LANE * LANE)
        elif ct >= 2 * pack:
            ct = max(pack, ((ct + 1) // 2) // pack * pack)
        # else: problem is tiny; a single step is fine.
    return ct, hwt


def _pick_batch_tile(N, H, W, elem_bytes, target=TARGET_BLOCK_BYTES):
    """Batches per grid step for the (cheap) soft-attention kernel."""
    per_batch = H * W * max(elem_bytes, 4)          # attn block + f32 work
    return max(1, min(N, target // max(1, per_batch)))


@jax.jit
def ham_forward(attention, x):
    """attention: (N, 1, H, W), x: (N, C, H, W)."""
    N, C, H, W = x.shape
    HW = H * W
    rmat, cmat = _sep_conv_mats(H, W)
    # TODO(synk): for very large H/W (>~1-2k) the dense (H,H)/(W,W) band
    # matrices should be tiled into (tile, tile+30) band slices to stay inside
    # v7x's 64 MiB VMEM; not needed at these resolutions.

    # --- Kernel 1: per-batch soft-attention map s = max(minmax(conv), attn) ---
    bn = _pick_batch_tile(N, H, W, attention.dtype.itemsize)
    s = pl.pallas_call(
        _soft_attn_kernel,
        out_shape=jax.ShapeDtypeStruct((N, H, W), x.dtype),
        grid_spec=pltpu.PrefetchScalarGridSpec(
            num_scalar_prefetch=0,
            grid=(_cdiv(N, bn),),
            in_specs=[
                pl.BlockSpec((bn, 1, H, W), lambda b: (b, 0, 0, 0)),
                pl.BlockSpec((H, H), lambda b: (0, 0)),
                pl.BlockSpec((W, W), lambda b: (0, 0)),
            ],
            out_specs=pl.BlockSpec((bn, H, W), lambda b: (b, 0, 0)),
        ),
        compiler_params=pltpu.CompilerParams(
            dimension_semantics=("parallel",)),
    )(attention, rmat, cmat)

    # --- Kernel 2: HBM-bound x * s, lane-dense (last dim tiles of H*W) -------
    s_flat = s.reshape(N, 1, HW)        # contiguous -> free reshapes in HBM
    x_flat = x.reshape(N, C, HW)
    ct, hwt = _pick_apply_tiles(N, C, HW, x.dtype.itemsize)
    out_flat = pl.pallas_call(
        _apply_attn_kernel,
        out_shape=jax.ShapeDtypeStruct((N, C, HW), x.dtype),
        grid_spec=pltpu.PrefetchScalarGridSpec(
            num_scalar_prefetch=0,
            grid=(N, _cdiv(C, ct), _cdiv(HW, hwt)),
            in_specs=[
                pl.BlockSpec((1, 1, hwt), lambda n, c, h: (n, 0, h)),
                pl.BlockSpec((1, ct, hwt), lambda n, c, h: (n, c, h)),
            ],
            out_specs=pl.BlockSpec((1, ct, hwt), lambda n, c, h: (n, c, h)),
        ),
        compiler_params=pltpu.CompilerParams(
            dimension_semantics=("parallel", "parallel", "parallel"),
            vmem_limit_bytes=32 << 20),
    )(s_flat, x_flat)
    return out_flat.reshape(N, C, H, W)


if __name__ == "__main__":
    key = jax.random.PRNGKey(0)
    k1, k2 = jax.random.split(key)
    N, C, H, W = 2, 4, 16, 16
    attention = jax.random.uniform(k1, (N, 1, H, W), dtype=jnp.float32)
    x = jax.random.normal(k2, (N, C, H, W), dtype=jnp.float32)

    out = jax.block_until_ready(ham_forward(attention, x))

    # Pure-JAX reference matching the PyTorch module (full 2D gaussian conv).
    gk = np.float32(make_gaussian_window(KSIZE, SIGMA))
    soft = jax.lax.conv_general_dilated(
        attention, jnp.asarray(gk)[None, None], (1, 1),
        [(PAD, PAD), (PAD, PAD)],
        precision=jax.lax.Precision.HIGHEST)
    mx = soft.max(axis=(2, 3), keepdims=True)
    mn = soft.min(axis=(2, 3), keepdims=True)
    soft = (soft - mn) / (mx - mn + 1e-8)
    ref = x * jnp.maximum(soft, attention)

    assert out.shape == (N, C, H, W)
    assert jnp.allclose(out, ref, atol=1e-4, rtol=1e-4), (
        float(jnp.max(jnp.abs(out - ref))))
    print("KERNEL_OK")
</pallas_src>

<mosaic_0001>
module attributes {stable_mosaic.version = 11 : i64} {
  func.func @_apply_attn_kernel(%arg0: i32, %arg1: i32, %arg2: i32, %arg3: memref<1x1x256xf32, #tpu.memory_space<vmem>>, %arg4: memref<1x4x256xf32, #tpu.memory_space<vmem>>, %arg5: memref<1x4x256xf32, #tpu.memory_space<vmem>>) attributes {dimension_semantics = [#tpu.dimension_semantics<parallel>, #tpu.dimension_semantics<parallel>, #tpu.dimension_semantics<parallel>], iteration_bounds = array<i64: 2, 1, 1>, scalar_prefetch = 0 : i64, scratch_operands = 0 : i64, tpu.core_type = #tpu.core_type<tc>, window_params = [{transform_indices = @transform_0, window_bounds = array<i64: 1, 1, 256>}, {transform_indices = @transform_1, window_bounds = array<i64: 1, 4, 256>}, {transform_indices = @transform_2, window_bounds = array<i64: 1, 4, 256>}]} {
    %c0 = arith.constant 0 : index
    %c0_0 = arith.constant 0 : index
    %c0_1 = arith.constant 0 : index
    %0 = vector.load %arg4[%c0, %c0_0, %c0_1] : memref<1x4x256xf32, #tpu.memory_space<vmem>>, vector<1x4x256xf32>
    %c0_2 = arith.constant 0 : index
    %c0_3 = arith.constant 0 : index
    %c0_4 = arith.constant 0 : index
    %1 = vector.load %arg3[%c0_2, %c0_3, %c0_4] : memref<1x1x256xf32, #tpu.memory_space<vmem>>, vector<1x1x256xf32>
    %2 = vector.broadcast %1 : vector<1x1x256xf32> to vector<1x4x256xf32>
    %3 = arith.mulf %0, %2 : vector<1x4x256xf32>
    %c0_5 = arith.constant 0 : index
    %c0_6 = arith.constant 0 : index
    %c0_7 = arith.constant 0 : index
    %4 = vector.load %arg5[%c0_5, %c0_6, %c0_7] : memref<1x4x256xf32, #tpu.memory_space<vmem>>, vector<1x4x256xf32>
    tpu.vector_store %arg5[%c0_5, %c0_6, %c0_7], %3 {strides = array<i32>} : memref<1x4x256xf32, #tpu.memory_space<vmem>>, vector<1x4x256xf32>,
    return
  }
  func.func @transform_0(%arg0: i32, %arg1: i32, %arg2: i32) -> (i32, i32, i32) {
    %c0_i32 = arith.constant 0 : i32
    %c0_i32_0 = arith.constant 0 : i32
    return %arg0, %c0_i32, %arg2 : i32, i32, i32
  }
  func.func @transform_1(%arg0: i32, %arg1: i32, %arg2: i32) -> (i32, i32, i32) {
    %c0_i32 = arith.constant 0 : i32
    return %arg0, %arg1, %arg2 : i32, i32, i32
  }
  func.func @transform_2(%arg0: i32, %arg1: i32, %arg2: i32) -> (i32, i32, i32) {
    %c0_i32 = arith.constant 0 : i32
    return %arg0, %arg1, %arg2 : i32, i32, i32
  }
}

module attributes {stable_mosaic.version = 11 : i64} {
  func.func @_soft_attn_kernel(%arg0: i32, %arg1: memref<2x1x16x16xf32, #tpu.memory_space<vmem>>, %arg2: memref<16x16xf32, #tpu.memory_space<vmem>>, %arg3: memref<16x16xf32, #tpu.memory_space<vmem>>, %arg4: memref<2x16x16xf32, #tpu.memory_space<vmem>>) attributes {dimension_semantics = [#tpu.dimension_semantics<parallel>], iteration_bounds = array<i64: 1>, scalar_prefetch = 0 : i64, scratch_operands = 0 : i64, tpu.core_type = #tpu.core_type<tc>, window_params = [{transform_indices = @transform_0, window_bounds = array<i64: 2, 1, 16, 16>}, {pipeline_mode = #tpu.pipeline_mode<synchronous>, transform_indices = @transform_1, window_bounds = array<i64: 16, 16>}, {pipeline_mode = #tpu.pipeline_mode<synchronous>, transform_indices = @transform_2, window_bounds = array<i64: 16, 16>}, {transform_indices = @transform_3, window_bounds = array<i64: 2, 16, 16>}]} {
    %c0 = arith.constant 0 : index
    %c0_0 = arith.constant 0 : index
    %0 = vector.load %arg2[%c0, %c0_0] : memref<16x16xf32, #tpu.memory_space<vmem>>, vector<16x16xf32>
    %c0_1 = arith.constant 0 : index
    %c0_2 = arith.constant 0 : index
    %1 = vector.load %arg3[%c0_1, %c0_2] : memref<16x16xf32, #tpu.memory_space<vmem>>, vector<16x16xf32>
    %c0_3 = arith.constant 0 : index
    %c0_4 = arith.constant 0 : index
    %c0_5 = arith.constant 0 : index
    %c0_6 = arith.constant 0 : index
    %2 = vector.load %arg1[%c0_3, %c0_4, %c0_5, %c0_6] : memref<2x1x16x16xf32, #tpu.memory_space<vmem>>, vector<1x1x16x16xf32>
    %3 = vector.shape_cast %2 : vector<1x1x16x16xf32> to vector<16x16xf32>
    %cst = arith.constant dense<0.000000e+00> : vector<16x16xf32>
    %4 = tpu.matmul %0, %3, %cst {dimension_numbers = #tpu.dot_dimension_numbers<[1], [0], [0], [1], [0, 0, 1, 1], [], []>, precision = #tpu.contract_precision<fp32>} : vector<16x16xf32>, vector<16x16xf32>, vector<16x16xf32> -> vector<16x16xf32>
    %cst_7 = arith.constant dense<0.000000e+00> : vector<16x16xf32>
    %5 = tpu.matmul %4, %1, %cst_7 {dimension_numbers = #tpu.dot_dimension_numbers<[1], [0], [0], [1], [0, 0, 1, 1], [], []>, precision = #tpu.contract_precision<fp32>} : vector<16x16xf32>, vector<16x16xf32>, vector<16x16xf32> -> vector<16x16xf32>
    %6 = vector.shape_cast %5 : vector<16x16xf32> to vector<1x16x16xf32>
    %cst_8 = arith.constant dense<0xFF800000> : vector<1xf32>
    %7 = vector.multi_reduction <maximumf>, %6, %cst_8 [1, 2] : vector<1x16x16xf32> to vector<1xf32>
    %8 = vector.shape_cast %7 : vector<1xf32> to vector<1x1x1xf32>
    %9 = vector.extract %8[0, 0, 0] : f32 from vector<1x1x1xf32>
    %10 = vector.shape_cast %5 : vector<16x16xf32> to vector<1x16x16xf32>
    %cst_9 = arith.constant dense<0x7F800000> : vector<1xf32>
    %11 = vector.multi_reduction <minimumf>, %10, %cst_9 [1, 2] : vector<1x16x16xf32> to vector<1xf32>
    %12 = vector.shape_cast %11 : vector<1xf32> to vector<1x1x1xf32>
    %13 = vector.extract %12[0, 0, 0] : f32 from vector<1x1x1xf32>
    %14 = vector.broadcast %13 : f32 to vector<16x16xf32>
    %15 = arith.subf %5, %14 : vector<16x16xf32>
    %16 = arith.subf %9, %13 : f32
    %cst_10 = arith.constant 9.99999993E-9 : f32
    %17 = arith.addf %16, %cst_10 : f32
    %cst_11 = arith.constant 1.000000e+00 : f32
    %18 = arith.divf %cst_11, %17 : f32
    %19 = vector.broadcast %18 : f32 to vector<16x16xf32>
    %20 = arith.mulf %15, %19 : vector<16x16xf32>
    %21 = arith.maximumf %20, %3 : vector<16x16xf32>
    %c0_12 = arith.constant 0 : index
    %c0_13 = arith.constant 0 : index
    %c0_14 = arith.constant 0 : index
    %22 = vector.load %arg4[%c0_12, %c0_13, %c0_14] : memref<2x16x16xf32, #tpu.memory_space<vmem>>, vector<1x16x16xf32>
    %23 = vector.shape_cast %22 : vector<1x16x16xf32> to vector<16x16xf32>
    %24 = vector.shape_cast %21 : vector<16x16xf32> to vector<1x16x16xf32>
    tpu.vector_store %arg4[%c0_12, %c0_13, %c0_14], %24 {strides = array<i32>} : memref<2x16x16xf32, #tpu.memory_space<vmem>>, vector<1x16x16xf32>,
    %c1 = arith.constant 1 : index
    %c0_15 = arith.constant 0 : index
    %c0_16 = arith.constant 0 : index
    %c0_17 = arith.constant 0 : index
    %25 = vector.load %arg1[%c1, %c0_15, %c0_16, %c0_17] : memref<2x1x16x16xf32, #tpu.memory_space<vmem>>, vector<1x1x16x16xf32>
    %26 = vector.shape_cast %25 : vector<1x1x16x16xf32> to vector<16x16xf32>
    %cst_18 = arith.constant dense<0.000000e+00> : vector<16x16xf32>
    %27 = tpu.matmul %0, %26, %cst_18 {dimension_numbers = #tpu.dot_dimension_numbers<[1], [0], [0], [1], [0, 0, 1, 1], [], []>, precision = #tpu.contract_precision<fp32>} : vector<16x16xf32>, vector<16x16xf32>, vector<16x16xf32> -> vector<16x16xf32>
    %cst_19 = arith.constant dense<0.000000e+00> : vector<16x16xf32>
    %28 = tpu.matmul %27, %1, %cst_19 {dimension_numbers = #tpu.dot_dimension_numbers<[1], [0], [0], [1], [0, 0, 1, 1], [], []>, precision = #tpu.contract_precision<fp32>} : vector<16x16xf32>, vector<16x16xf32>, vector<16x16xf32> -> vector<16x16xf32>
    %29 = vector.shape_cast %28 : vector<16x16xf32> to vector<1x16x16xf32>
    %cst_20 = arith.constant dense<0xFF800000> : vector<1xf32>
    %30 = vector.multi_reduction <maximumf>, %29, %cst_20 [1, 2] : vector<1x16x16xf32> to vector<1xf32>
    %31 = vector.shape_cast %30 : vector<1xf32> to vector<1x1x1xf32>
    %32 = vector.extract %31[0, 0, 0] : f32 from vector<1x1x1xf32>
    %33 = vector.shape_cast %28 : vector<16x16xf32> to vector<1x16x16xf32>
    %cst_21 = arith.constant dense<0x7F800000> : vector<1xf32>
    %34 = vector.multi_reduction <minimumf>, %33, %cst_21 [1, 2] : vector<1x16x16xf32> to vector<1xf32>
    %35 = vector.shape_cast %34 : vector<1xf32> to vector<1x1x1xf32>
    %36 = vector.extract %35[0, 0, 0] : f32 from vector<1x1x1xf32>
    %37 = vector.broadcast %36 : f32 to vector<16x16xf32>
    %38 = arith.subf %28, %37 : vector<16x16xf32>
    %39 = arith.subf %32, %36 : f32
    %cst_22 = arith.constant 9.99999993E-9 : f32
    %40 = arith.addf %39, %cst_22 : f32
    %cst_23 = arith.constant 1.000000e+00 : f32
    %41 = arith.divf %cst_23, %40 : f32
    %42 = vector.broadcast %41 : f32 to vector<16x16xf32>
    %43 = arith.mulf %38, %42 : vector<16x16xf32>
    %44 = arith.maximumf %43, %26 : vector<16x16xf32>
    %c1_24 = arith.constant 1 : index
    %c0_25 = arith.constant 0 : index
    %c0_26 = arith.constant 0 : index
    %45 = vector.load %arg4[%c1_24, %c0_25, %c0_26] : memref<2x16x16xf32, #tpu.memory_space<vmem>>, vector<1x16x16xf32>
    %46 = vector.shape_cast %45 : vector<1x16x16xf32> to vector<16x16xf32>
    %47 = vector.shape_cast %44 : vector<16x16xf32> to vector<1x16x16xf32>
    tpu.vector_store %arg4[%c1_24, %c0_25, %c0_26], %47 {strides = array<i32>} : memref<2x16x16xf32, #tpu.memory_space<vmem>>, vector<1x16x16xf32>,
    return
  }
  func.func @transform_0(%arg0: i32) -> (i32, i32, i32, i32) {
    %c0_i32 = arith.constant 0 : i32
    %c0_i32_0 = arith.constant 0 : i32
    %c0_i32_1 = arith.constant 0 : i32
    %c0_i32_2 = arith.constant 0 : i32
    return %arg0, %c0_i32, %c0_i32_0, %c0_i32_1 : i32, i32, i32, i32
  }
  func.func @transform_1(%arg0: i32) -> (i32, i32) {
    %c0_i32 = arith.constant 0 : i32
    %c0_i32_0 = arith.constant 0 : i32
    %c0_i32_1 = arith.constant 0 : i32
    return %c0_i32, %c0_i32_0 : i32, i32
  }
  func.func @transform_2(%arg0: i32) -> (i32, i32) {
    %c0_i32 = arith.constant 0 : i32
    %c0_i32_0 = arith.constant 0 : i32
    %c0_i32_1 = arith.constant 0 : i32
    return %c0_i32, %c0_i32_0 : i32, i32
  }
  func.func @transform_3(%arg0: i32) -> (i32, i32, i32) {
    %c0_i32 = arith.constant 0 : i32
    %c0_i32_0 = arith.constant 0 : i32
    %c0_i32_1 = arith.constant 0 : i32
    return %arg0, %c0_i32, %c0_i32_0 : i32, i32, i32
  }
}

</mosaic_0001>

<llo_original>
// kernel: ham_forward.3
$region0: #{ham_forward.3}
  #allocation0 [shape = 'u32[]', space=smem, size = 0x4, offset = 0x4, fixed_abs, tag = 'smem constant byte address 0x4 - core index']
  #allocation1 [shape = 'u32[144,128]{1,0:T(1,128)}', space=vmem, size = 0x12000, scoped, tag = 'internal scratch']
  %s0 = inlined_call_operand.vmem [shape: f32[2,1,256], index: 0, kind: input, shape index: {}]
  %s1 = inlined_call_operand.vmem [shape: f32[2,4,256], index: 1, kind: input, shape index: {}]
  %s2 = inlined_call_operand.vmem [shape: f32[2,4,256], index: 2, kind: output, shape index: {}]
  %s3 = sld [smem:[#allocation0]]
  $region41: #{ham_forward.3} parent=0
    _
  %s5 = ssub.s32 1, %s3
  %s6 = scalar_select 0, %s5, %s3
  loop: start=0, step=1, limit=4
  $region2: #{ham_forward.3} parent=0 // loop_pre_header
    _
  $region3: #{ham_forward.3} parent=0 // loop_header
    %s8 = sphi 0, %s12
    %p9 = scmp.ge.s32.totalorder %s8, 4
    %s15 = sphi 0, %s34
    %s16 = sphi 0, %s30
    %s17 = sphi 0, %s26
    %s18 = sphi 0, %s15
    %s19 = sphi 0, %s16
    %s20 = sphi 0, %s17
    %s21 = sphi 0, %s18
    %s22 = sphi 0, %s19
    %s23 = sphi 0, %s20
    %s39 = sphi 0, %s41
    %s42 = sphi 0, %s39
    %s43 = sphi 0, %s42
    %s59 = sphi 0, %s43
    %s69 = sphi 0, %s71
    %s72 = sphi 0, %s69
    %s73 = sphi 0, %s72
    %s89 = sphi 0, %s73
    %s99 = sphi 0, %s101
    %s102 = sphi 0, %s99
    %s103 = sphi 0, %s102
    %s119 = sphi 0, %s103
  $region4: #{ham_forward.3} parent=0 // loop_header_branch
    %11 = sbr.rel (%p9) target = $region8
  $region5: #{ham_forward.3} parent=0 // loop_body
    %s13 = ssub.s32 %s8, 1
    %s14 = ssub.s32 %s8, 2
    %s24 = sadd.s32 1, %s17
    %p25 = scmp.ge.s32.totalorder %s24, 1
    %s26 = scalar_select %p25, 0, %s24
    %s27 = sadd.s32 1, %s16
    %s28 = scalar_select %p25, %s27, %s16
    %p29 = scmp.ge.s32.totalorder %s28, 1
    %s30 = scalar_select %p29, 0, %s28
    %s31 = sadd.s32 1, %s15
    %s32 = scalar_select %p29, %s31, %s15
    %p33 = scmp.ge.s32.totalorder %s32, 2
    %s34 = scalar_select %p33, 0, %s32
    %s35 = ssub.s32 %s15, %s34
    %s36 = ssub.s32 %s17, %s26
    %s37 = sor.u32 %s35, %s36
    %p38 = scmp.eq.s32.totalorder %s37, 0
    %s40 = sadd.s32 %s39, 1
    %s41 = scalar_select %p38, %s39, %s40
    %p44 = pneg %p38
    %p45 = scmp.eq.s32.totalorder %s8, 1
    %p46 = por %p44, %p45
    %p47 = scmp.ne.s32.totalorder %s39, %s42
    %p48 = scmp.eq.s32.totalorder %s8, 0
    %p49 = por %p47, %p48
    %p50 = scmp.ne.s32.totalorder %s39, %s42
    %p51 = scmp.eq.s32.totalorder %s13, 1
    %p52 = por %p50, %p51
    %p53 = scmp.ne.s32.totalorder %s42, %s43
    %p54 = scmp.eq.s32.totalorder %s13, 0
    %p55 = por %p53, %p54
    %p56 = scmp.ne.s32.totalorder %s42, %s43
    %p57 = scmp.eq.s32.totalorder %s14, 1
    %p58 = por %p56, %p57
    %p60 = scmp.ne.s32.totalorder %s43, %s59
    %p61 = scmp.eq.s32.totalorder %s14, 0
    %p62 = por %p60, %p61
    %s63 = ssub.s32 %s15, %s34
    %s64 = ssub.s32 %s16, %s30
    %s65 = sor.u32 %s63, %s64
    %s66 = ssub.s32 %s17, %s26
    %s67 = sor.u32 %s65, %s66
    %p68 = scmp.eq.s32.totalorder %s67, 0
    %s70 = sadd.s32 %s69, 1
    %s71 = scalar_select %p68, %s69, %s70
    %p74 = pneg %p68
    %p75 = scmp.eq.s32.totalorder %s8, 1
    %p76 = por %p74, %p75
    %p77 = scmp.ne.s32.totalorder %s69, %s72
    %p78 = scmp.eq.s32.totalorder %s8, 0
    %p79 = por %p77, %p78
    %p80 = scmp.ne.s32.totalorder %s69, %s72
    %p81 = scmp.eq.s32.totalorder %s13, 1
    %p82 = por %p80, %p81
    %p83 = scmp.ne.s32.totalorder %s72, %s73
    %p84 = scmp.eq.s32.totalorder %s13, 0
    %p85 = por %p83, %p84
    %p86 = scmp.ne.s32.totalorder %s72, %s73
    %p87 = scmp.eq.s32.totalorder %s14, 1
    %p88 = por %p86, %p87
    %p90 = scmp.ne.s32.totalorder %s73, %s89
    %p91 = scmp.eq.s32.totalorder %s14, 0
    %p92 = por %p90, %p91
    %s93 = ssub.s32 %s15, %s34
    %s94 = ssub.s32 %s16, %s30
    %s95 = sor.u32 %s93, %s94
    %s96 = ssub.s32 %s17, %s26
    %s97 = sor.u32 %s95, %s96
    %p98 = scmp.eq.s32.totalorder %s97, 0
    %s100 = sadd.s32 %s99, 1
    %s101 = scalar_select %p98, %s99, %s100
    %p104 = pneg %p98
    %p105 = scmp.eq.s32.totalorder %s8, 1
    %p106 = por %p104, %p105
    %p107 = scmp.ne.s32.totalorder %s99, %s102
    %p108 = scmp.eq.s32.totalorder %s8, 0
    %p109 = por %p107, %p108
    %p110 = scmp.ne.s32.totalorder %s99, %s102
    %p111 = scmp.eq.s32.totalorder %s13, 1
    %p112 = por %p110, %p111
    %p113 = scmp.ne.s32.totalorder %s102, %s103
    %p114 = scmp.eq.s32.totalorder %s13, 0
    %p115 = por %p113, %p114
    %p116 = scmp.ne.s32.totalorder %s102, %s103
    %p117 = scmp.eq.s32.totalorder %s14, 1
    %p118 = por %p116, %p117
    %p120 = scmp.ne.s32.totalorder %s103, %s119
    %p121 = scmp.eq.s32.totalorder %s14, 0
    %p122 = por %p120, %p121
    %p123 = scmp.le.s32.totalorder 1, %s8
    %p124 = scmp.lt.s32.totalorder %s8, 3
    %p125 = pnand %p123, %p124
    %p126 = pneg %p125
    // Predicated region
    $region9: #{ham_forward.3} parent=5 // pred_check
      _
    $region10: #{ham_forward.3} parent=5 // pred_check_branch
      %128 = sbr.rel (%p125) target = $region12
    $region11: #{ham_forward.3} parent=5 // pred_region
      %s129 = ssub.s32 %s8, 1
    $region12: #{ham_forward.3} parent=5 // pred_fallthru
      _
    %p130 = scmp.lt.s32.totalorder %s8, 2
    // Predicated region
    $region13: #{ham_forward.3} parent=5 // pred_check
      %p131 = pneg %p130
    $region14: #{ham_forward.3} parent=5 // pred_check_branch
      %133 = sbr.rel (%p131) target = $region16
    $region15: #{ham_forward.3} parent=5 // pred_region
      // Predicated region
      $region17: #{ham_forward.3} parent=15 // pred_check
        %p134 = pneg %p49
      $region18: #{ham_forward.3} parent=15 // pred_check_branch
        %136 = sbr.rel (%p134) target = $region20
      $region19: #{ham_forward.3} parent=15 // pred_region
        %s137 = smul.u32 2, %s17
        %p138 = scmp.lt.s32.totalorder %s15, 1
        %s139 = scalar_select %p138, %s15, 1
        %p140 = scmp.lt.s32.totalorder %s137, 1
        %s141 = scalar_select %p140, %s137, 1
        %s142 = smul.addr %s139, 2
        %s143 = sadd.s32 %s141, %s142
        %s144 = scalar_lea.vmem %s0, %s143
        %s145 = smul.u32 2, %s17
      $region20: #{ham_forward.3} parent=15 // pred_fallthru
        _
      // Predicated region
      $region21: #{ham_forward.3} parent=15 // pred_check
        %p146 = pneg %p79
      $region22: #{ham_forward.3} parent=15 // pred_check_branch
        %148 = sbr.rel (%p146) target = $region24
      $region23: #{ham_forward.3} parent=15 // pred_region
        %s149 = smul.u32 2, %s17
        %p150 = scmp.lt.s32.totalorder %s15, 1
        %s151 = scalar_select %p150, %s15, 1
        %p152 = scmp.lt.s32.totalorder %s16, 0
        %s153 = scalar_select %p152, %s16, 0
        %p154 = scmp.lt.s32.totalorder %s149, 1
        %s155 = scalar_select %p154, %s149, 1
        %s156 = smul.addr %s153, 2
        %s157 = sadd.s32 %s155, %s156
        %s158 = smul.addr %s151, 2
        %s159 = sadd.s32 %s157, %s158
        %s160 = smul.addr %s159, 4
        %s161 = scalar_lea.vmem %s1, %s160
        %s162 = smul.u32 2, %s17
      $region24: #{ham_forward.3} parent=15 // pred_fallthru
        _
    $region16: #{ham_forward.3} parent=5 // pred_fallthru
      _
    %p163 = scmp.le.s32.totalorder 1, %s8
    %p164 = scmp.lt.s32.totalorder %s8, 3
    %p165 = pnand %p163, %p164
    %p166 = pneg %p165
    // Predicated region
    $region25: #{ham_forward.3} parent=5 // pred_check
      _
    $region26: #{ham_forward.3} parent=5 // pred_check_branch
      %168 = sbr.rel (%p165) target = $region28
    $region27: #{ham_forward.3} parent=5 // pred_region
      %s169 = ssub.s32 %s8, 1
      %s170 = smul.u32 2, %s20
      %p171 = scmp.lt.s32.totalorder %s18, 1
      %s172 = scalar_select %p171, %s18, 1
      %p173 = scmp.lt.s32.totalorder %s170, 1
      %s174 = scalar_select %p173, %s170, 1
      %s175 = smul.addr %s172, 2
      %s176 = sadd.s32 %s174, %s175
      %s177 = scalar_lea.vmem %s0, %s176
      %p178 = pneg %p55
      %p179 = pneg %p52
      %s180 = smul.u32 2, %s20
      %p181 = scmp.lt.s32.totalorder %s18, 1
      %s182 = scalar_select %p181, %s18, 1
      %p183 = scmp.lt.s32.totalorder %s19, 0
      %s184 = scalar_select %p183, %s19, 0
      %p185 = scmp.lt.s32.totalorder %s180, 1
      %s186 = scalar_select %p185, %s180, 1
      %s187 = smul.addr %s184, 2
      %s188 = sadd.s32 %s186, %s187
      %s189 = smul.addr %s182, 2
      %s190 = sadd.s32 %s188, %s189
      %s191 = smul.addr %s190, 4
      %s192 = scalar_lea.vmem %s1, %s191
      %p193 = pneg %p85
      %p194 = pneg %p82
      %p195 = pneg %p115
      %p196 = pneg %p112
      %s197 = smul.u32 2, %s20
      %p198 = scmp.lt.s32.totalorder %s18, 1
      %s199 = scalar_select %p198, %s18, 1
      %p200 = scmp.lt.s32.totalorder %s19, 0
      %s201 = scalar_select %p200, %s19, 0
      %p202 = scmp.lt.s32.totalorder %s197, 1
      %s203 = scalar_select %p202, %s197, 1
      %s204 = smul.addr %s201, 2
      %s205 = sadd.s32 %s203, %s204
      %s206 = smul.addr %s199, 2
      %s207 = sadd.s32 %s205, %s206
      %s208 = smul.addr %s207, 4
      %s209 = scalar_lea.vmem %s2, %s208
      %s210 = smul.u32 2, %s20
      %p211 = scmp.lt.s32.totalorder %s18, 1
      %s212 = scalar_select %p211, %s18, 1
      %p213 = scmp.lt.s32.totalorder %s210, 1
      %s214 = scalar_select %p213, %s210, 1
      %s215 = smul.addr %s212, 2
      %s216 = sadd.s32 %s214, %s215
      %s217 = scalar_lea.vmem %s0, %s216
      %s218 = smul.u32 2, %s20
      %s219 = smul.u32 2, %s20
      %p220 = scmp.lt.s32.totalorder %s18, 1
      %s221 = scalar_select %p220, %s18, 1
      %p222 = scmp.lt.s32.totalorder %s19, 0
      %s223 = scalar_select %p222, %s19, 0
      %p224 = scmp.lt.s32.totalorder %s219, 1
      %s225 = scalar_select %p224, %s219, 1
      %s226 = smul.addr %s223, 2
      %s227 = sadd.s32 %s225, %s226
      %s228 = smul.addr %s221, 2
      %s229 = sadd.s32 %s227, %s228
      %s230 = smul.addr %s229, 4
      %s231 = scalar_lea.vmem %s1, %s230
      %s232 = smul.u32 2, %s20
      %s233 = smul.u32 2, %s20
      %p234 = scmp.lt.s32.totalorder %s18, 1
      %s235 = scalar_select %p234, %s18, 1
      %p236 = scmp.lt.s32.totalorder %s19, 0
      %s237 = scalar_select %p236, %s19, 0
      %p238 = scmp.lt.s32.totalorder %s233, 1
      %s239 = scalar_select %p238, %s233, 1
      %s240 = smul.addr %s237, 2
      %s241 = sadd.s32 %s239, %s240
      %s242 = smul.addr %s235, 2
      %s243 = sadd.s32 %s241, %s242
      %s244 = smul.addr %s243, 4
      %s245 = scalar_lea.vmem %s2, %s244
      %s246 = smul.u32 2, %s20
      %v247 = vld [vmem:[%s231] sm:$0xff]
      %v248 = vld [vmem:[%s217] sm:$0x3]
      %v250 = vlaneseq
      %v251 = vshrl.u32 %v250, 7
      %v252 = vsub.s32 0, %v251
      %v253 = vrot.slane %v248, %v252
      %v254 = vlaneseq
      %v255 = vshrl.u32 %v254, 7
      %v256 = vsub.s32 1, %v255
      %v257 = vrot.slane %v248, %v256
      %v258 = vcombine.low %v253, %v257
      %v260 = vmul.f32 %v247, %v258
      %261 = vst [vmem:[%s245] sm:$0xff] %v260
      %s262 = smul.u32 2, %s20
      %p263 = scmp.lt.s32.totalorder %s18, 1
      %s264 = scalar_select %p263, %s18, 1
      %p265 = scmp.lt.s32.totalorder %s19, 0
      %s266 = scalar_select %p265, %s19, 0
      %p267 = scmp.lt.s32.totalorder %s262, 1
      %s268 = scalar_select %p267, %s262, 1
      %s269 = smul.addr %s266, 2
      %s270 = sadd.s32 %s268, %s269
      %s271 = smul.addr %s264, 2
      %s272 = sadd.s32 %s270, %s271
      %s273 = smul.addr %s272, 4
      %s274 = scalar_lea.vmem %s2, %s273
      // Predicated region
      $region29: #{ham_forward.3} parent=27 // pred_check
        %p275 = pneg %p112
      $region30: #{ham_forward.3} parent=27 // pred_check_branch
        %277 = sbr.rel (%p275) target = $region32
      $region31: #{ham_forward.3} parent=27 // pred_region
        %s278 = smul.u32 2, %s20
      $region32: #{ham_forward.3} parent=27 // pred_fallthru
        _
    $region28: #{ham_forward.3} parent=5 // pred_fallthru
      _
    %p279 = scmp.le.s32.totalorder 2, %s8
    // Predicated region
    $region33: #{ham_forward.3} parent=5 // pred_check
      %p280 = pneg %p279
    $region34: #{ham_forward.3} parent=5 // pred_check_branch
      %282 = sbr.rel (%p280) target = $region36
    $region35: #{ham_forward.3} parent=5 // pred_region
      %s283 = ssub.s32 %s8, 2
      // Predicated region
      $region37: #{ham_forward.3} parent=35 // pred_check
        %p284 = pneg %p118
      $region38: #{ham_forward.3} parent=35 // pred_check_branch
        %286 = sbr.rel (%p284) target = $region40
      $region39: #{ham_forward.3} parent=35 // pred_region
        %s287 = smul.u32 2, %s23
        %p288 = scmp.lt.s32.totalorder %s21, 1
        %s289 = scalar_select %p288, %s21, 1
        %p290 = scmp.lt.s32.totalorder %s22, 0
        %s291 = scalar_select %p290, %s22, 0
        %p292 = scmp.lt.s32.totalorder %s287, 1
        %s293 = scalar_select %p292, %s287, 1
        %s294 = smul.addr %s291, 2
        %s295 = sadd.s32 %s293, %s294
        %s296 = smul.addr %s289, 2
        %s297 = sadd.s32 %s295, %s296
        %s298 = smul.addr %s297, 4
        %s299 = scalar_lea.vmem %s2, %s298
      $region40: #{ham_forward.3} parent=35 // pred_fallthru
        _
    $region36: #{ham_forward.3} parent=5 // pred_fallthru
      _
  $region6: #{ham_forward.3} parent=0 // loop_footer
    %s12 = sadd.s32 1, %s8
  $region7: #{ham_forward.3} parent=0 // loop_footer_branch
    %7 = sbr.rel target = $region3
  $region8: #{ham_forward.3} parent=0 // loop_exit
    _

// kernel: ham_forward.2
$region0: #{ham_forward.2}
  #allocation0 [shape = 'u32[]', space=smem, size = 0x4, offset = 0x4, fixed_abs, tag = 'smem constant byte address 0x4 - core index']
  #allocation1 [shape = 'u32[144,128]{1,0:T(1,128)}', space=vmem, size = 0x12000, scoped, tag = 'internal scratch']
  %s0 = inlined_call_operand.vmem [shape: f32[2,1,16,16], index: 0, kind: input, shape index: {}]
  %s1 = inlined_call_operand.vmem [shape: f32[16,16], index: 1, kind: input, shape index: {}, may-alias: {1,2}]
  %s2 = inlined_call_operand.vmem [shape: f32[16,16], index: 2, kind: input, shape index: {}, may-alias: {1,2}]
  %s3 = inlined_call_operand.vmem [shape: f32[2,16,16], index: 3, kind: output, shape index: {}]
  %s4 = sld [smem:[#allocation0]]
  $region22: #{ham_forward.2} parent=0
    _
  %s6 = ssub.s32 1, %s4
  %s7 = scalar_select 0, %s6, %s4
  // Predicated region
  $region2: #{ham_forward.2} parent=0 // pred_check
    _
  $region3: #{ham_forward.2} parent=0 // pred_check_branch
    %9 = sbr.rel (0) target = $region5
  $region4: #{ham_forward.2} parent=0 // pred_region
    _
  $region5: #{ham_forward.2} parent=0 // pred_fallthru
    _
  // Predicated region
  $region6: #{ham_forward.2} parent=0 // pred_check
    _
  $region7: #{ham_forward.2} parent=0 // pred_check_branch
    %11 = sbr.rel (0) target = $region9
  $region8: #{ham_forward.2} parent=0 // pred_region
    _
  $region9: #{ham_forward.2} parent=0 // pred_fallthru
    _
  // Predicated region
  $region10: #{ham_forward.2} parent=0 // pred_check
    _
  $region11: #{ham_forward.2} parent=0 // pred_check_branch
    %13 = sbr.rel (0) target = $region13
  $region12: #{ham_forward.2} parent=0 // pred_region
    _
  $region13: #{ham_forward.2} parent=0 // pred_fallthru
    _
  %v14 = vld [vmem:[%s1] sm:$0xff]
  %v15 = vld [vmem:[%s1 + $0x8] sm:$0xff]
  %v16 = vld [vmem:[%s2] sm:$0xff]
  %v17 = vld [vmem:[%s2 + $0x8] sm:$0xff]
  %v18 = vld [vmem:[%s0] sm:$0xff]
  %v19 = vld [vmem:[%s0 + $0x8] sm:$0xff]
  %vm20 = vcmask 130048
  %v22 = vsel %vm20, %v14, 0
  %v25 = vsel %vm20, %v15, 0
  %27 = vmatprep.subr.mxu0 0.0
  %v28 = vand.u32 %v18, 4294901760
  %29 = vmatpush1.msra.mxu0 %v28
  %30 = vmatprep.subr.mxu0 0.0
  %v31 = vand.u32 %v19, 4294901760
  %32 = vmatpush1.msra.mxu0 %v31
  %33 = vmatprep.subr.mxu0 0.0
  %34 = vmatpush1.msra.mxu0 0.0
  %35 = vmatprep.subr.mxu0 0.0
  %36 = vmatpush1.msra.mxu0 0.0
  %37 = vmatprep.subr.mxu0 0.0
  %38 = vmatpush1.msra.mxu0 0.0
  %39 = vmatprep.subr.mxu0 0.0
  %40 = vmatpush1.msra.mxu0 0.0
  %41 = vmatprep.subr.mxu0 0.0
  %42 = vmatpush1.msra.mxu0 0.0
  %43 = vmatprep.subr.mxu0 0.0
  %44 = vmatpush1.msra.mxu0 0.0
  %45 = vmatprep.subr.mxu0 0.0
  %46 = vmatpush1.msra.mxu0 0.0
  %47 = vmatprep.subr.mxu0 0.0
  %48 = vmatpush1.msra.mxu0 0.0
  %49 = vmatprep.subr.mxu0 0.0
  %50 = vmatpush1.msra.mxu0 0.0
  %51 = vmatprep.subr.mxu0 0.0
  %52 = vmatpush1.msra.mxu0 0.0
  %53 = vmatprep.subr.mxu0 0.0
  %54 = vmatpush1.msra.mxu0 0.0
  %55 = vmatprep.subr.mxu0 0.0
  %56 = vmatpush1.msra.mxu0 0.0
  %57 = vmatprep.subr.mxu0 0.0
  %58 = vmatpush1.msra.mxu0 0.0
  %59 = vmatprep.subr.mxu0 0.0
  %60 = vmatpush1.msra.mxu0 0.0
  %61 = vmatprep.subr.mxu0 0.0
  %62 = vmatpush1.msra.mxu0 0.0
  %63 = vmatprep.subr.mxu0 0.0
  %64 = vmatpush1.msra.mxu0 0.0
  %65 = vmatprep.subr.mxu0 0.0
  %66 = vmatpush1.msra.mxu0 0.0
  %67 = vmatprep.subr.mxu0 0.0
  %68 = vmatpush1.msra.mxu0 0.0
  %69 = vmatprep.subr.mxu0 0.0
  %70 = vmatpush1.msra.mxu0 0.0
  %71 = vmatprep.subr.mxu0 0.0
  %72 = vmatpush1.msra.mxu0 0.0
  %73 = vmatprep.subr.mxu0 0.0
  %74 = vmatpush1.msra.mxu0 0.0
  %75 = vmatprep.subr.mxu0 0.0
  %76 = vmatpush1.msra.mxu0 0.0
  %77 = vmatprep.subr.mxu0 0.0
  %78 = vmatpush1.msra.mxu0 0.0
  %79 = vmatprep.subr.mxu0 0.0
  %80 = vmatpush1.msra.mxu0 0.0
  %81 = vmatprep.subr.mxu0 0.0
  %82 = vmatpush1.msra.mxu0 0.0
  %83 = vmatprep.subr.mxu0 0.0
  %84 = vmatpush1.msra.mxu0 0.0
  %85 = vmatprep.subr.mxu0 0.0
  %86 = vmatpush1.msra.mxu0 0.0
  %87 = vmatprep.subr.mxu0 0.0
  %88 = vmatpush1.msra.mxu0 0.0
  %89 = vmatprep.subr.mxu0 0.0
  %90 = vmatpush1.msra.mxu0 0.0
  %91 = vmatprep.subr.mxu0 0.0
  %92 = vmatpush1.msra.mxu0 0.0
  %93 = vmatprep.mubr.f32.mxu0 0.0
  %v94 = vand.u32 %v22, 4294901760
  %v95 = vsub.f32 %v22, %v94
  %v96 = vand.u32 %v95, 4294901760
  %v97 = vsub.f32 %v95, %v96
  %v98 = vand.u32 %v97, 4294901760
  %99 = vmatmul.mubr.f32.gmra.mrb[0].mxu0 %v98
  %v100 = vpop.f32.mrb[0].mxu0
  %v101 = vadd.f32 0.0, %v100
  %v102 = vpop.f32.mrb[0].mxu0
  %103 = vmatprep.mubr.f32.mxu0 0.0
  %v104 = vand.u32 %v25, 4294901760
  %v105 = vsub.f32 %v25, %v104
  %v106 = vand.u32 %v105, 4294901760
  %v107 = vsub.f32 %v105, %v106
  %v108 = vand.u32 %v107, 4294901760
  %109 = vmatmul.mubr.f32.gmra.mrb[0].mxu0 %v108
  %v110 = vpop.f32.mrb[0].mxu0
  %v111 = vadd.f32 0.0, %v110
  %v112 = vpop.f32.mrb[0].mxu0
  %113 = vdwg.mxu0
  %114 = vmatprep.subr.mxu0 0.0
  %v115 = vand.u32 %v18, 4294901760
  %v116 = vsub.f32 %v18, %v115
  %v117 = vand.u32 %v116, 4294901760
  %v118 = vsub.f32 %v116, %v117
  %v119 = vand.u32 %v118, 4294901760
  %120 = vmatpush1.msra.mxu0 %v119
  %121 = vmatprep.subr.mxu0 0.0
  %v122 = vand.u32 %v19, 4294901760
  %v123 = vsub.f32 %v19, %v122
  %v124 = vand.u32 %v123, 4294901760
  %v125 = vsub.f32 %v123, %v124
  %v126 = vand.u32 %v125, 4294901760
  %127 = vmatpush1.msra.mxu0 %v126
  %128 = vmatprep.subr.mxu0 0.0
  %129 = vmatpush1.msra.mxu0 0.0
  %130 = vmatprep.subr.mxu0 0.0
  %131 = vmatpush1.msra.mxu0 0.0
  %132 = vmatprep.subr.mxu0 0.0
  %133 = vmatpush1.msra.mxu0 0.0
  %134 = vmatprep.subr.mxu0 0.0
  %135 = vmatpush1.msra.mxu0 0.0
  %136 = vmatprep.subr.mxu0 0.0
  %137 = vmatpush1.msra.mxu0 0.0
  %138 = vmatprep.subr.mxu0 0.0
  %139 = vmatpush1.msra.mxu0 0.0
  %140 = vmatprep.subr.mxu0 0.0
  %141 = vmatpush1.msra.mxu0 0.0
  %142 = vmatprep.subr.mxu0 0.0
  %143 = vmatpush1.msra.mxu0 0.0
  %144 = vmatprep.subr.mxu0 0.0
  %145 = vmatpush1.msra.mxu0 0.0
  %146 = vmatprep.subr.mxu0 0.0
  %147 = vmatpush1.msra.mxu0 0.0
  %148 = vmatprep.subr.mxu0 0.0
  %149 = vmatpush1.msra.mxu0 0.0
  %150 = vmatprep.subr.mxu0 0.0
  %151 = vmatpush1.msra.mxu0 0.0
  %152 = vmatprep.subr.mxu0 0.0
  %153 = vmatpush1.msra.mxu0 0.0
  %154 = vmatprep.subr.mxu0 0.0
  %155 = vmatpush1.msra.mxu0 0.0
  %156 = vmatprep.subr.mxu0 0.0
  %157 = vmatpush1.msra.mxu0 0.0
  %158 = vmatprep.subr.mxu0 0.0
  %159 = vmatpush1.msra.mxu0 0.0
  %160 = vmatprep.subr.mxu0 0.0
  %161 = vmatpush1.msra.mxu0 0.0
  %162 = vmatprep.subr.mxu0 0.0
  %163 = vmatpush1.msra.mxu0 0.0
  %164 = vmatprep.subr.mxu0 0.0
  %165 = vmatpush1.msra.mxu0 0.0
  %166 = vmatprep.subr.mxu0 0.0
  %167 = vmatpush1.msra.mxu0 0.0
  %168 = vmatprep.subr.mxu0 0.0
  %169 = vmatpush1.msra.mxu0 0.0
  %170 = vmatprep.subr.mxu0 0.0
  %171 = vmatpush1.msra.mxu0 0.0
  %172 = vmatprep.subr.mxu0 0.0
  %173 = vmatpush1.msra.mxu0 0.0
  %174 = vmatprep.subr.mxu0 0.0
  %175 = vmatpush1.msra.mxu0 0.0
  %176 = vmatprep.subr.mxu0 0.0
  %177 = vmatpush1.msra.mxu0 0.0
  %178 = vmatprep.subr.mxu0 0.0
  %179 = vmatpush1.msra.mxu0 0.0
  %180 = vmatprep.subr.mxu0 0.0
  %181 = vmatpush1.msra.mxu0 0.0
  %182 = vmatprep.subr.mxu0 0.0
  %183 = vmatpush1.msra.mxu0 0.0
  %184 = vmatprep.subr.mxu0 0.0
  %185 = vmatpush1.msra.mxu0 0.0
  %186 = vmatprep.subr.mxu0 0.0
  %187 = vmatpush1.msra.mxu0 0.0
  %188 = vmatprep.mubr.f32.mxu0 0.0
  %v189 = vand.u32 %v22, 4294901760
  %190 = vmatmul.mubr.f32.gmra.mrb[0].mxu0 %v189
  %v191 = vpop.f32.mrb[0].mxu0
  %v192 = vadd.f32 %v101, %v191
  %v193 = vpop.f32.mrb[0].mxu0
  %194 = vmatprep.mubr.f32.mxu0 0.0
  %v195 = vand.u32 %v25, 4294901760
  %196 = vmatmul.mubr.f32.gmra.mrb[0].mxu0 %v195
  %v197 = vpop.f32.mrb[0].mxu0
  %v198 = vadd.f32 %v111, %v197
  %v199 = vpop.f32.mrb[0].mxu0
  %200 = vdwg.mxu0
  %201 = vmatprep.subr.mxu0 0.0
  %v202 = vand.u32 %v18, 4294901760
  %v203 = vsub.f32 %v18, %v202
  %204 = vmatpush1.msra.mxu0 %v203
  %205 = vmatprep.subr.mxu0 0.0
  %v206 = vand.u32 %v19, 4294901760
  %v207 = vsub.f32 %v19, %v206
  %208 = vmatpush1.msra.mxu0 %v207
  %209 = vmatprep.subr.mxu0 0.0
  %210 = vmatpush1.msra.mxu0 0.0
  %211 = vmatprep.subr.mxu0 0.0
  %212 = vmatpush1.msra.mxu0 0.0
  %213 = vmatprep.subr.mxu0 0.0
  %214 = vmatpush1.msra.mxu0 0.0
  %215 = vmatprep.subr.mxu0 0.0
  %216 = vmatpush1.msra.mxu0 0.0
  %217 = vmatprep.subr.mxu0 0.0
  %218 = vmatpush1.msra.mxu0 0.0
  %219 = vmatprep.subr.mxu0 0.0
  %220 = vmatpush1.msra.mxu0 0.0
  %221 = vmatprep.subr.mxu0 0.0
  %222 = vmatpush1.msra.mxu0 0.0
  %223 = vmatprep.subr.mxu0 0.0
  %224 = vmatpush1.msra.mxu0 0.0
  %225 = vmatprep.subr.mxu0 0.0
  %226 = vmatpush1.msra.mxu0 0.0
  %227 = vmatprep.subr.mxu0 0.0
  %228 = vmatpush1.msra.mxu0 0.0
  %229 = vmatprep.subr.mxu0 0.0
  %230 = vmatpush1.msra.mxu0 0.0
  %231 = vmatprep.subr.mxu0 0.0
  %232 = vmatpush1.msra.mxu0 0.0
  %233 = vmatprep.subr.mxu0 0.0
  %234 = vmatpush1.msra.mxu0 0.0
  %235 = vmatprep.subr.mxu0 0.0
  %236 = vmatpush1.msra.mxu0 0.0
  %237 = vmatprep.subr.mxu0 0.0
  %238 = vmatpush1.msra.mxu0 0.0
  %239 = vmatprep.subr.mxu0 0.0
  %240 = vmatpush1.msra.mxu0 0.0
  %241 = vmatprep.subr.mxu0 0.0
  %242 = vmatpush1.msra.mxu0 0.0
  %243 = vmatprep.subr.mxu0 0.0
  %244 = vmatpush1.msra.mxu0 0.0
  %245 = vmatprep.subr.mxu0 0.0
  %246 = vmatpush1.msra.mxu0 0.0
  %247 = vmatprep.subr.mxu0 0.0
  %248 = vmatpush1.msra.mxu0 0.0
  %249 = vmatprep.subr.mxu0 0.0
  %250 = vmatpush1.msra.mxu0 0.0
  %251 = vmatprep.subr.mxu0 0.0
  %252 = vmatpush1.msra.mxu0 0.0
  %253 = vmatprep.subr.mxu0 0.0
  %254 = vmatpush1.msra.mxu0 0.0
  %255 = vmatprep.subr.mxu0 0.0
  %256 = vmatpush1.msra.mxu0 0.0
  %257 = vmatprep.subr.mxu0 0.0
  %258 = vmatpush1.msra.mxu0 0.0
  %259 = vmatprep.subr.mxu0 0.0
  %260 = vmatpush1.msra.mxu0 0.0
  %261 = vmatprep.subr.mxu0 0.0
  %262 = vmatpush1.msra.mxu0 0.0
  %263 = vmatprep.subr.mxu0 0.0
  %264 = vmatpush1.msra.mxu0 0.0
  %265 = vmatprep.subr.mxu0 0.0
  %266 = vmatpush1.msra.mxu0 0.0
  %267 = vmatprep.subr.mxu0 0.0
  %268 = vmatpush1.msra.mxu0 0.0
  %269 = vmatprep.mubr.f32.mxu0 0.0
  %v270 = vand.u32 %v22, 4294901760
  %v271 = vsub.f32 %v22, %v270
  %272 = vmatmul.mubr.f32.gmra.mrb[0].mxu0 %v271
  %v273 = vpop.f32.mrb[0].mxu0
  %v274 = vadd.f32 %v192, %v273
  %v275 = vpop.f32.mrb[0].mxu0
  %276 = vmatprep.mubr.f32.mxu0 0.0
  %v277 = vand.u32 %v25, 4294901760
  %v278 = vsub.f32 %v25, %v277
  %279 = vmatmul.mubr.f32.gmra.mrb[0].mxu0 %v278
  %v280 = vpop.f32.mrb[0].mxu0
  %v281 = vadd.f32 %v198, %v280
  %v282 = vpop.f32.mrb[0].mxu0
  %283 = vdwg.mxu0
  %284 = vmatprep.subr.mxu0 0.0
  %v285 = vand.u32 %v18, 4294901760
  %286 = vmatpush1.msra.mxu0 %v285
  %287 = vmatprep.subr.mxu0 0.0
  %v288 = vand.u32 %v19, 4294901760
  %289 = vmatpush1.msra.mxu0 %v288
  %290 = vmatprep.subr.mxu0 0.0
  %291 = vmatpush1.msra.mxu0 0.0
  %292 = vmatprep.subr.mxu0 0.0
  %293 = vmatpush1.msra.mxu0 0.0
  %294 = vmatprep.subr.mxu0 0.0
  %295 = vmatpush1.msra.mxu0 0.0
  %296 = vmatprep.subr.mxu0 0.0
  %297 = vmatpush1.msra.mxu0 0.0
  %298 = vmatprep.subr.mxu0 0.0
  %299 = vmatpush1.msra.mxu0 0.0
  %300 = vmatprep.subr.mxu0 0.0
  %301 = vmatpush1.msra.mxu0 0.0
  %302 = vmatprep.subr.mxu0 0.0
  %303 = vmatpush1.msra.mxu0 0.0
  %304 = vmatprep.subr.mxu0 0.0
  %305 = vmatpush1.msra.mxu0 0.0
  %306 = vmatprep.subr.mxu0 0.0
  %307 = vmatpush1.msra.mxu0 0.0
  %308 = vmatprep.subr.mxu0 0.0
  %309 = vmatpush1.msra.mxu0 0.0
  %310 = vmatprep.subr.mxu0 0.0
  %311 = vmatpush1.msra.mxu0 0.0
  %312 = vmatprep.subr.mxu0 0.0
  %313 = vmatpush1.msra.mxu0 0.0
  %314 = vmatprep.subr.mxu0 0.0
  %315 = vmatpush1.msra.mxu0 0.0
  %316 = vmatprep.subr.mxu0 0.0
  %317 = vmatpush1.msra.mxu0 0.0
  %318 = vmatprep.subr.mxu0 0.0
  %319 = vmatpush1.msra.mxu0 0.0
  %320 = vmatprep.subr.mxu0 0.0
  %321 = vmatpush1.msra.mxu0 0.0
  %322 = vmatprep.subr.mxu0 0.0
  %323 = vmatpush1.msra.mxu0 0.0
  %324 = vmatprep.subr.mxu0 0.0
  %325 = vmatpush1.msra.mxu0 0.0
  %326 = vmatprep.subr.mxu0 0.0
  %327 = vmatpush1.msra.mxu0 0.0
  %328 = vmatprep.subr.mxu0 0.0
  %329 = vmatpush1.msra.mxu0 0.0
  %330 = vmatprep.subr.mxu0 0.0
  %331 = vmatpush1.msra.mxu0 0.0
  %332 = vmatprep.subr.mxu0 0.0
  %333 = vmatpush1.msra.mxu0 0.0
  %334 = vmatprep.subr.mxu0 0.0
  %335 = vmatpush1.msra.mxu0 0.0
  %336 = vmatprep.subr.mxu0 0.0
  %337 = vmatpush1.msra.mxu0 0.0
  %338 = vmatprep.subr.mxu0 0.0
  %339 = vmatpush1.msra.mxu0 0.0
  %340 = vmatprep.subr.mxu0 0.0
  %341 = vmatpush1.msra.mxu0 0.0
  %342 = vmatprep.subr.mxu0 0.0
  %343 = vmatpush1.msra.mxu0 0.0
  %344 = vmatprep.subr.mxu0 0.0
  %345 = vmatpush1.msra.mxu0 0.0
  %346 = vmatprep.subr.mxu0 0.0
  %347 = vmatpush1.msra.mxu0 0.0
  %348 = vmatprep.subr.mxu0 0.0
  %349 = vmatpush1.msra.mxu0 0.0
  %350 = vmatprep.mubr.f32.mxu0 0.0
  %v351 = vand.u32 %v22, 4294901760
  %v352 = vsub.f32 %v22, %v351
  %v353 = vand.u32 %v352, 4294901760
  %354 = vmatmul.mubr.f32.gmra.mrb[0].mxu0 %v353
  %v355 = vpop.f32.mrb[0].mxu0
  %v356 = vadd.f32 %v274, %v355
  %v357 = vpop.f32.mrb[0].mxu0
  %358 = vmatprep.mubr.f32.mxu0 0.0
  %v359 = vand.u32 %v25, 4294901760
  %v360 = vsub.f32 %v25, %v359
  %v361 = vand.u32 %v360, 4294901760
  %362 = vmatmul.mubr.f32.gmra.mrb[0].mxu0 %v361
  %v363 = vpop.f32.mrb[0].mxu0
  %v364 = vadd.f32 %v281, %v363
  %v365 = vpop.f32.mrb[0].mxu0
  %366 = vdwg.mxu0
  %367 = vmatprep.subr.mxu0 0.0
  %v368 = vand.u32 %v18, 4294901760
  %v369 = vsub.f32 %v18, %v368
  %v370 = vand.u32 %v369, 4294901760
  %371 = vmatpush1.msra.mxu0 %v370
  %372 = vmatprep.subr.mxu0 0.0
  %v373 = vand.u32 %v19, 4294901760
  %v374 = vsub.f32 %v19, %v373
  %v375 = vand.u32 %v374, 4294901760
  %376 = vmatpush1.msra.mxu0 %v375
  %377 = vmatprep.subr.mxu0 0.0
  %378 = vmatpush1.msra.mxu0 0.0
  %379 = vmatprep.subr.mxu0 0.0
  %380 = vmatpush1.msra.mxu0 0.0
  %381 = vmatprep.subr.mxu0 0.0
  %382 = vmatpush1.msra.mxu0 0.0
  %383 = vmatprep.subr.mxu0 0.0
  %384 = vmatpush1.msra.mxu0 0.0
  %385 = vmatprep.subr.mxu0 0.0
  %386 = vmatpush1.msra.mxu0 0.0
  %387 = vmatprep.subr.mxu0 0.0
  %388 = vmatpush1.msra.mxu0 0.0
  %389 = vmatprep.subr.mxu0 0.0
  %390 = vmatpush1.msra.mxu0 0.0
  %391 = vmatprep.subr.mxu0 0.0
  %392 = vmatpush1.msra.mxu0 0.0
  %393 = vmatprep.subr.mxu0 0.0
  %394 = vmatpush1.msra.mxu0 0.0
  %395 = vmatprep.subr.mxu0 0.0
  %396 = vmatpush1.msra.mxu0 0.0
  %397 = vmatprep.subr.mxu0 0.0
  %398 = vmatpush1.msra.mxu0 0.0
  %399 = vmatprep.subr.mxu0 0.0
  %400 = vmatpush1.msra.mxu0 0.0
  %401 = vmatprep.subr.mxu0 0.0
  %402 = vmatpush1.msra.mxu0 0.0
  %403 = vmatprep.subr.mxu0 0.0
  %404 = vmatpush1.msra.mxu0 0.0
  %405 = vmatprep.subr.mxu0 0.0
  %406 = vmatpush1.msra.mxu0 0.0
  %407 = vmatprep.subr.mxu0 0.0
  %408 = vmatpush1.msra.mxu0 0.0
  %409 = vmatprep.subr.mxu0 0.0
  %410 = vmatpush1.msra.mxu0 0.0
  %411 = vmatprep.subr.mxu0 0.0
  %412 = vmatpush1.msra.mxu0 0.0
  %413 = vmatprep.subr.mxu0 0.0
  %414 = vmatpush1.msra.mxu0 0.0
  %415 = vmatprep.subr.mxu0 0.0
  %416 = vmatpush1.msra.mxu0 0.0
  %417 = vmatprep.subr.mxu0 0.0
  %418 = vmatpush1.msra.mxu0 0.0
  %419 = vmatprep.subr.mxu0 0.0
  %420 = vmatpush1.msra.mxu0 0.0
  %421 = vmatprep.subr.mxu0 0.0
  %422 = vmatpush1.msra.mxu0 0.0
  %423 = vmatprep.subr.mxu0 0.0
  %424 = vmatpush1.msra.mxu0 0.0
  %425 = vmatprep.subr.mxu0 0.0
  %426 = vmatpush1.msra.mxu0 0.0
  %427 = vmatprep.subr.mxu0 0.0
  %428 = vmatpush1.msra.mxu0 0.0
  %429 = vmatprep.subr.mxu0 0.0
  %430 = vmatpush1.msra.mxu0 0.0
  %431 = vmatprep.subr.mxu0 0.0
  %432 = vmatpush1.msra.mxu0 0.0
  %433 = vmatprep.subr.mxu0 0.0
  %434 = vmatpush1.msra.mxu0 0.0
  %435 = vmatprep.subr.mxu0 0.0
  %436 = vmatpush1.msra.mxu0 0.0
  %437 = vmatprep.mubr.f32.mxu0 0.0
  %v438 = vand.u32 %v22, 4294901760
  %439 = vmatmul.mubr.f32.gmra.mrb[0].mxu0 %v438
  %v440 = vpop.f32.mrb[0].mxu0
  %v441 = vadd.f32 %v356, %v440
  %v442 = vpop.f32.mrb[0].mxu0
  %443 = vmatprep.mubr.f32.mxu0 0.0
  %v444 = vand.u32 %v25, 4294901760
  %445 = vmatmul.mubr.f32.gmra.mrb[0].mxu0 %v444
  %v446 = vpop.f32.mrb[0].mxu0
  %v447 = vadd.f32 %v364, %v446
  %v448 = vpop.f32.mrb[0].mxu0
  %449 = vdwg.mxu0
  %450 = vmatprep.subr.mxu0 0.0
  %v451 = vand.u32 %v18, 4294901760
  %452 = vmatpush1.msra.mxu0 %v451
  %453 = vmatprep.subr.mxu0 0.0
  %v454 = vand.u32 %v19, 4294901760
  %455 = vmatpush1.msra.mxu0 %v454
  %456 = vmatprep.subr.mxu0 0.0
  %457 = vmatpush1.msra.mxu0 0.0
  %458 = vmatprep.subr.mxu0 0.0
  %459 = vmatpush1.msra.mxu0 0.0
  %460 = vmatprep.subr.mxu0 0.0
  %461 = vmatpush1.msra.mxu0 0.0
  %462 = vmatprep.subr.mxu0 0.0
  %463 = vmatpush1.msra.mxu0 0.0
  %464 = vmatprep.subr.mxu0 0.0
  %465 = vmatpush1.msra.mxu0 0.0
  %466 = vmatprep.subr.mxu0 0.0
  %467 = vmatpush1.msra.mxu0 0.0
  %468 = vmatprep.subr.mxu0 0.0
  %469 = vmatpush1.msra.mxu0 0.0
  %470 = vmatprep.subr.mxu0 0.0
  %471 = vmatpush1.msra.mxu0 0.0
  %472 = vmatprep.subr.mxu0 0.0
  %473 = vmatpush1.msra.mxu0 0.0
  %474 = vmatprep.subr.mxu0 0.0
  %475 = vmatpush1.msra.mxu0 0.0
  %476 = vmatprep.subr.mxu0 0.0
  %477 = vmatpush1.msra.mxu0 0.0
  %478 = vmatprep.subr.mxu0 0.0
  %479 = vmatpush1.msra.mxu0 0.0
  %480 = vmatprep.subr.mxu0 0.0
  %481 = vmatpush1.msra.mxu0 0.0
  %482 = vmatprep.subr.mxu0 0.0
  %483 = vmatpush1.msra.mxu0 0.0
  %484 = vmatprep.subr.mxu0 0.0
  %485 = vmatpush1.msra.mxu0 0.0
  %486 = vmatprep.subr.mxu0 0.0
  %487 = vmatpush1.msra.mxu0 0.0
  %488 = vmatprep.subr.mxu0 0.0
  %489 = vmatpush1.msra.mxu0 0.0
  %490 = vmatprep.subr.mxu0 0.0
  %491 = vmatpush1.msra.mxu0 0.0
  %492 = vmatprep.subr.mxu0 0.0
  %493 = vmatpush1.msra.mxu0 0.0
  %494 = vmatprep.subr.mxu0 0.0
  %495 = vmatpush1.msra.mxu0 0.0
  %496 = vmatprep.subr.mxu0 0.0
  %497 = vmatpush1.msra.mxu0 0.0
  %498 = vmatprep.subr.mxu0 0.0
  %499 = vmatpush1.msra.mxu0 0.0
  %500 = vmatprep.subr.mxu0 0.0
  %501 = vmatpush1.msra.mxu0 0.0
  %502 = vmatprep.subr.mxu0 0.0
  %503 = vmatpush1.msra.mxu0 0.0
  %504 = vmatprep.subr.mxu0 0.0
  %505 = vmatpush1.msra.mxu0 0.0
  %506 = vmatprep.subr.mxu0 0.0
  %507 = vmatpush1.msra.mxu0 0.0
  %508 = vmatprep.subr.mxu0 0.0
  %509 = vmatpush1.msra.mxu0 0.0
  %510 = vmatprep.subr.mxu0 0.0
  %511 = vmatpush1.msra.mxu0 0.0
  %512 = vmatprep.subr.mxu0 0.0
  %513 = vmatpush1.msra.mxu0 0.0
  %514 = vmatprep.subr.mxu0 0.0
  %515 = vmatpush1.msra.mxu0 0.0
  %516 = vmatprep.mubr.f32.mxu0 0.0
  %v517 = vand.u32 %v22, 4294901760
  %518 = vmatmul.mubr.f32.gmra.mrb[0].mxu0 %v517
  %v519 = vpop.f32.mrb[0].mxu0
  %v520 = vadd.f32 %v441, %v519
  %v521 = vpop.f32.mrb[0].mxu0
  %522 = vmatprep.mubr.f32.mxu0 0.0
  %v523 = vand.u32 %v25, 4294901760
  %524 = vmatmul.mubr.f32.gmra.mrb[0].mxu0 %v523
  %v525 = vpop.f32.mrb[0].mxu0
  %v526 = vadd.f32 %v447, %v525
  %v527 = vpop.f32.mrb[0].mxu0
  %528 = vdwg.mxu0
  %v530 = vsel %vm20, %v520, 0
  %v533 = vsel %vm20, %v526, 0
  %535 = vmatprep.subr.mxu0 0.0
  %v536 = vand.u32 %v16, 4294901760
  %537 = vmatpush1.msra.mxu0 %v536
  %538 = vmatprep.subr.mxu0 0.0
  %v539 = vand.u32 %v17, 4294901760
  %540 = vmatpush1.msra.mxu0 %v539
  %541 = vmatprep.subr.mxu0 0.0
  %542 = vmatpush1.msra.mxu0 0.0
  %543 = vmatprep.subr.mxu0 0.0
  %544 = vmatpush1.msra.mxu0 0.0
  %545 = vmatprep.subr.mxu0 0.0
  %546 = vmatpush1.msra.mxu0 0.0
  %547 = vmatprep.subr.mxu0 0.0
  %548 = vmatpush1.msra.mxu0 0.0
  %549 = vmatprep.subr.mxu0 0.0
  %550 = vmatpush1.msra.mxu0 0.0
  %551 = vmatprep.subr.mxu0 0.0
  %552 = vmatpush1.msra.mxu0 0.0
  %553 = vmatprep.subr.mxu0 0.0
  %554 = vmatpush1.msra.mxu0 0.0
  %555 = vmatprep.subr.mxu0 0.0
  %556 = vmatpush1.msra.mxu0 0.0
  %557 = vmatprep.subr.mxu0 0.0
  %558 = vmatpush1.msra.mxu0 0.0
  %559 = vmatprep.subr.mxu0 0.0
  %560 = vmatpush1.msra.mxu0 0.0
  %561 = vmatprep.subr.mxu0 0.0
  %562 = vmatpush1.msra.mxu0 0.0
  %563 = vmatprep.subr.mxu0 0.0
  %564 = vmatpush1.msra.mxu0 0.0
  %565 = vmatprep.subr.mxu0 0.0
  %566 = vmatpush1.msra.mxu0 0.0
  %567 = vmatprep.subr.mxu0 0.0
  %568 = vmatpush1.msra.mxu0 0.0
  %569 = vmatprep.subr.mxu0 0.0
  %570 = vmatpush1.msra.mxu0 0.0
  %571 = vmatprep.subr.mxu0 0.0
  %572 = vmatpush1.msra.mxu0 0.0
  %573 = vmatprep.subr.mxu0 0.0
  %574 = vmatpush1.msra.mxu0 0.0
  %575 = vmatprep.subr.mxu0 0.0
  %576 = vmatpush1.msra.mxu0 0.0
  %577 = vmatprep.subr.mxu0 0.0
  %578 = vmatpush1.msra.mxu0 0.0
  %579 = vmatprep.subr.mxu0 0.0
  %580 = vmatpush1.msra.mxu0 0.0
  %581 = vmatprep.subr.mxu0 0.0
  %582 = vmatpush1.msra.mxu0 0.0
  %583 = vmatprep.subr.mxu0 0.0
  %584 = vmatpush1.msra.mxu0 0.0
  %585 = vmatprep.subr.mxu0 0.0
  %586 = vmatpush1.msra.mxu0 0.0
  %587 = vmatprep.subr.mxu0 0.0
  %588 = vmatpush1.msra.mxu0 0.0
  %589 = vmatprep.subr.mxu0 0.0
  %590 = vmatpush1.msra.mxu0 0.0
  %591 = vmatprep.subr.mxu0 0.0
  %592 = vmatpush1.msra.mxu0 0.0
  %593 = vmatprep.subr.mxu0 0.0
  %594 = vmatpush1.msra.mxu0 0.0
  %595 = vmatprep.subr.mxu0 0.0
  %596 = vmatpush1.msra.mxu0 0.0
  %597 = vmatprep.subr.mxu0 0.0
  %598 = vmatpush1.msra.mxu0 0.0
  %599 = vmatprep.subr.mxu0 0.0
  %600 = vmatpush1.msra.mxu0 0.0
  %601 = vmatprep.mubr.f32.mxu0 0.0
  %v602 = vand.u32 %v530, 4294901760
  %v603 = vsub.f32 %v530, %v602
  %v604 = vand.u32 %v603, 4294901760
  %v605 = vsub.f32 %v603, %v604
  %v606 = vand.u32 %v605, 4294901760
  %607 = vmatmul.mubr.f32.gmra.mrb[0].mxu0 %v606
  %v608 = vpop.f32.mrb[0].mxu0
  %v609 = vadd.f32 0.0, %v608
  %v610 = vpop.f32.mrb[0].mxu0
  %611 = vmatprep.mubr.f32.mxu0 0.0
  %v612 = vand.u32 %v533, 4294901760
  %v613 = vsub.f32 %v533, %v612
  %v614 = vand.u32 %v613, 4294901760
  %v615 = vsub.f32 %v613, %v614
  %v616 = vand.u32 %v615, 4294901760
  %617 = vmatmul.mubr.f32.gmra.mrb[0].mxu0 %v616
  %v618 = vpop.f32.mrb[0].mxu0
  %v619 = vadd.f32 0.0, %v618
  %v620 = vpop.f32.mrb[0].mxu0
  %621 = vdwg.mxu0
  %622 = vmatprep.subr.mxu0 0.0
  %v623 = vand.u32 %v16, 4294901760
  %v624 = vsub.f32 %v16, %v623
  %v625 = vand.u32 %v624, 4294901760
  %v626 = vsub.f32 %v624, %v625
  %v627 = vand.u32 %v626, 4294901760
  %628 = vmatpush1.msra.mxu0 %v627
  %629 = vmatprep.subr.mxu0 0.0
  %v630 = vand.u32 %v17, 4294901760
  %v631 = vsub.f32 %v17, %v630
  %v632 = vand.u32 %v631, 4294901760
  %v633 = vsub.f32 %v631, %v632
  %v634 = vand.u32 %v633, 4294901760
  %635 = vmatpush1.msra.mxu0 %v634
  %636 = vmatprep.subr.mxu0 0.0
  %637 = vmatpush1.msra.mxu0 0.0
  %638 = vmatprep.subr.mxu0 0.0
  %639 = vmatpush1.msra.mxu0 0.0
  %640 = vmatprep.subr.mxu0 0.0
  %641 = vmatpush1.msra.mxu0 0.0
  %642 = vmatprep.subr.mxu0 0.0
  %643 = vmatpush1.msra.mxu0 0.0
  %644 = vmatprep.subr.mxu0 0.0
  %645 = vmatpush1.msra.mxu0 0.0
  %646 = vmatprep.subr.mxu0 0.0
  %647 = vmatpush1.msra.mxu0 0.0
  %648 = vmatprep.subr.mxu0 0.0
  %649 = vmatpush1.msra.mxu0 0.0
  %650 = vmatprep.subr.mxu0 0.0
  %651 = vmatpush1.msra.mxu0 0.0
  %652 = vmatprep.subr.mxu0 0.0
  %653 = vmatpush1.msra.mxu0 0.0
  %654 = vmatprep.subr.mxu0 0.0
  %655 = vmatpush1.msra.mxu0 0.0
  %656 = vmatprep.subr.mxu0 0.0
  %657 = vmatpush1.msra.mxu0 0.0
  %658 = vmatprep.subr.mxu0 0.0
  %659 = vmatpush1.msra.mxu0 0.0
  %660 = vmatprep.subr.mxu0 0.0
  %661 = vmatpush1.msra.mxu0 0.0
  %662 = vmatprep.subr.mxu0 0.0
  %663 = vmatpush1.msra.mxu0 0.0
  %664 = vmatprep.subr.mxu0 0.0
  %665 = vmatpush1.msra.mxu0 0.0
  %666 = vmatprep.subr.mxu0 0.0
  %667 = vmatpush1.msra.mxu0 0.0
  %668 = vmatprep.subr.mxu0 0.0
  %669 = vmatpush1.msra.mxu0 0.0
  %670 = vmatprep.subr.mxu0 0.0
  %671 = vmatpush1.msra.mxu0 0.0
  %672 = vmatprep.subr.mxu0 0.0
  %673 = vmatpush1.msra.mxu0 0.0
  %674 = vmatprep.subr.mxu0 0.0
  %675 = vmatpush1.msra.mxu0 0.0
  %676 = vmatprep.subr.mxu0 0.0
  %677 = vmatpush1.msra.mxu0 0.0
  %678 = vmatprep.subr.mxu0 0.0
  %679 = vmatpush1.msra.mxu0 0.0
  %680 = vmatprep.subr.mxu0 0.0
  %681 = vmatpush1.msra.mxu0 0.0
  %682 = vmatprep.subr.mxu0 0.0
  %683 = vmatpush1.msra.mxu0 0.0
  %684 = vmatprep.subr.mxu0 0.0
  %685 = vmatpush1.msra.mxu0 0.0
  %686 = vmatprep.subr.mxu0 0.0
  %687 = vmatpush1.msra.mxu0 0.0
  %688 = vmatprep.subr.mxu0 0.0
  %689 = vmatpush1.msra.mxu0 0.0
  %690 = vmatprep.subr.mxu0 0.0
  %691 = vmatpush1.msra.mxu0 0.0
  %692 = vmatprep.subr.mxu0 0.0
  %693 = vmatpush1.msra.mxu0 0.0
  %694 = vmatprep.subr.mxu0 0.0
  %695 = vmatpush1.msra.mxu0 0.0
  %696 = vmatprep.mubr.f32.mxu0 0.0
  %v697 = vand.u32 %v530, 4294901760
  %698 = vmatmul.mubr.f32.gmra.mrb[0].mxu0 %v697
  %v699 = vpop.f32.mrb[0].mxu0
  %v700 = vadd.f32 %v609, %v699
  %v701 = vpop.f32.mrb[0].mxu0
  %702 = vmatprep.mubr.f32.mxu0 0.0
  %v703 = vand.u32 %v533, 4294901760
  %704 = vmatmul.mubr.f32.gmra.mrb[0].mxu0 %v703
  %v705 = vpop.f32.mrb[0].mxu0
  %v706 = vadd.f32 %v619, %v705
  %v707 = vpop.f32.mrb[0].mxu0
  %708 = vdwg.mxu0
  %709 = vmatprep.subr.mxu0 0.0
  %v710 = vand.u32 %v16, 4294901760
  %v711 = vsub.f32 %v16, %v710
  %712 = vmatpush1.msra.mxu0 %v711
  %713 = vmatprep.subr.mxu0 0.0
  %v714 = vand.u32 %v17, 4294901760
  %v715 = vsub.f32 %v17, %v714
  %716 = vmatpush1.msra.mxu0 %v715
  %717 = vmatprep.subr.mxu0 0.0
  %718 = vmatpush1.msra.mxu0 0.0
  %719 = vmatprep.subr.mxu0 0.0
  %720 = vmatpush1.msra.mxu0 0.0
  %721 = vmatprep.subr.mxu0 0.0
  %722 = vmatpush1.msra.mxu0 0.0
  %723 = vmatprep.subr.mxu0 0.0
  %724 = vmatpush1.msra.mxu0 0.0
  %725 = vmatprep.subr.mxu0 0.0
  %726 = vmatpush1.msra.mxu0 0.0
  %727 = vmatprep.subr.mxu0 0.0
  %728 = vmatpush1.msra.mxu0 0.0
  %729 = vmatprep.subr.mxu0 0.0
  %730 = vmatpush1.msra.mxu0 0.0
  %731 = vmatprep.subr.mxu0 0.0
  %732 = vmatpush1.msra.mxu0 0.0
  %733 = vmatprep.subr.mxu0 0.0
  %734 = vmatpush1.msra.mxu0 0.0
  %735 = vmatprep.subr.mxu0 0.0
  %736 = vmatpush1.msra.mxu0 0.0
  %737 = vmatprep.subr.mxu0 0.0
  %738 = vmatpush1.msra.mxu0 0.0
  %739 = vmatprep.subr.mxu0 0.0
  %740 = vmatpush1.msra.mxu0 0.0
  %741 = vmatprep.subr.mxu0 0.0
  %742 = vmatpush1.msra.mxu0 0.0
  %743 = vmatprep.subr.mxu0 0.0
  %744 = vmatpush1.msra.mxu0 0.0
  %745 = vmatprep.subr.mxu0 0.0
  %746 = vmatpush1.msra.mxu0 0.0
  %747 = vmatprep.subr.mxu0 0.0
  %748 = vmatpush1.msra.mxu0 0.0
  %749 = vmatprep.subr.mxu0 0.0
  %750 = vmatpush1.msra.mxu0 0.0
  %751 = vmatprep.subr.mxu0 0.0
  %752 = vmatpush1.msra.mxu0 0.0
  %753 = vmatprep.subr.mxu0 0.0
  %754 = vmatpush1.msra.mxu0 0.0
  %755 = vmatprep.subr.mxu0 0.0
  %756 = vmatpush1.msra.mxu0 0.0
  %757 = vmatprep.subr.mxu0 0.0
  %758 = vmatpush1.msra.mxu0 0.0
  %759 = vmatprep.subr.mxu0 0.0
  %760 = vmatpush1.msra.mxu0 0.0
  %761 = vmatprep.subr.mxu0 0.0
  %762 = vmatpush1.msra.mxu0 0.0
  %763 = vmatprep.subr.mxu0 0.0
  %764 = vmatpush1.msra.mxu0 0.0
  %765 = vmatprep.subr.mxu0 0.0
  %766 = vmatpush1.msra.mxu0 0.0
  %767 = vmatprep.subr.mxu0 0.0
  %768 = vmatpush1.msra.mxu0 0.0
  %769 = vmatprep.subr.mxu0 0.0
  %770 = vmatpush1.msra.mxu0 0.0
  %771 = vmatprep.subr.mxu0 0.0
  %772 = vmatpush1.msra.mxu0 0.0
  %773 = vmatprep.subr.mxu0 0.0
  %774 = vmatpush1.msra.mxu0 0.0
  %775 = vmatprep.subr.mxu0 0.0
  %776 = vmatpush1.msra.mxu0 0.0
  %777 = vmatprep.mubr.f32.mxu0 0.0
  %v778 = vand.u32 %v530, 4294901760
  %v779 = vsub.f32 %v530, %v778
  %780 = vmatmul.mubr.f32.gmra.mrb[0].mxu0 %v779
  %v781 = vpop.f32.mrb[0].mxu0
  %v782 = vadd.f32 %v700, %v781
  %v783 = vpop.f32.mrb[0].mxu0
  %784 = vmatprep.mubr.f32.mxu0 0.0
  %v785 = vand.u32 %v533, 4294901760
  %v786 = vsub.f32 %v533, %v785
  %787 = vmatmul.mubr.f32.gmra.mrb[0].mxu0 %v786
  %v788 = vpop.f32.mrb[0].mxu0
  %v789 = vadd.f32 %v706, %v788
  %v790 = vpop.f32.mrb[0].mxu0
  %791 = vdwg.mxu0
  %792 = vmatprep.subr.mxu0 0.0
  %v793 = vand.u32 %v16, 4294901760
  %794 = vmatpush1.msra.mxu0 %v793
  %795 = vmatprep.subr.mxu0 0.0
  %v796 = vand.u32 %v17, 4294901760
  %797 = vmatpush1.msra.mxu0 %v796
  %798 = vmatprep.subr.mxu0 0.0
  %799 = vmatpush1.msra.mxu0 0.0
  %800 = vmatprep.subr.mxu0 0.0
  %801 = vmatpush1.msra.mxu0 0.0
  %802 = vmatprep.subr.mxu0 0.0
  %803 = vmatpush1.msra.mxu0 0.0
  %804 = vmatprep.subr.mxu0 0.0
  %805 = vmatpush1.msra.mxu0 0.0
  %806 = vmatprep.subr.mxu0 0.0
  %807 = vmatpush1.msra.mxu0 0.0
  %808 = vmatprep.subr.mxu0 0.0
  %809 = vmatpush1.msra.mxu0 0.0
  %810 = vmatprep.subr.mxu0 0.0
  %811 = vmatpush1.msra.mxu0 0.0
  %812 = vmatprep.subr.mxu0 0.0
  %813 = vmatpush1.msra.mxu0 0.0
  %814 = vmatprep.subr.mxu0 0.0
  %815 = vmatpush1.msra.mxu0 0.0
  %816 = vmatprep.subr.mxu0 0.0
  %817 = vmatpush1.msra.mxu0 0.0
  %818 = vmatprep.subr.mxu0 0.0
  %819 = vmatpush1.msra.mxu0 0.0
  %820 = vmatprep.subr.mxu0 0.0
  %821 = vmatpush1.msra.mxu0 0.0
  %822 = vmatprep.subr.mxu0 0.0
  %823 = vmatpush1.msra.mxu0 0.0
  %824 = vmatprep.subr.mxu0 0.0
  %825 = vmatpush1.msra.mxu0 0.0
  %826 = vmatprep.subr.mxu0 0.0
  %827 = vmatpush1.msra.mxu0 0.0
  %828 = vmatprep.subr.mxu0 0.0
  %829 = vmatpush1.msra.mxu0 0.0
  %830 = vmatprep.subr.mxu0 0.0
  %831 = vmatpush1.msra.mxu0 0.0
  %832 = vmatprep.subr.mxu0 0.0
  %833 = vmatpush1.msra.mxu0 0.0
  %834 = vmatprep.subr.mxu0 0.0
  %835 = vmatpush1.msra.mxu0 0.0
  %836 = vmatprep.subr.mxu0 0.0
  %837 = vmatpush1.msra.mxu0 0.0
  %838 = vmatprep.subr.mxu0 0.0
  %839 = vmatpush1.msra.mxu0 0.0
  %840 = vmatprep.subr.mxu0 0.0
  %841 = vmatpush1.msra.mxu0 0.0
  %842 = vmatprep.subr.mxu0 0.0
  %843 = vmatpush1.msra.mxu0 0.0
  %844 = vmatprep.subr.mxu0 0.0
  %845 = vmatpush1.msra.mxu0 0.0
  %846 = vmatprep.subr.mxu0 0.0
  %847 = vmatpush1.msra.mxu0 0.0
  %848 = vmatprep.subr.mxu0 0.0
  %849 = vmatpush1.msra.mxu0 0.0
  %850 = vmatprep.subr.mxu0 0.0
  %851 = vmatpush1.msra.mxu0 0.0
  %852 = vmatprep.subr.mxu0 0.0
  %853 = vmatpush1.msra.mxu0 0.0
  %854 = vmatprep.subr.mxu0 0.0
  %855 = vmatpush1.msra.mxu0 0.0
  %856 = vmatprep.subr.mxu0 0.0
  %857 = vmatpush1.msra.mxu0 0.0
  %858 = vmatprep.mubr.f32.mxu0 0.0
  %v859 = vand.u32 %v530, 4294901760
  %v860 = vsub.f32 %v530, %v859
  %v861 = vand.u32 %v860, 4294901760
  %862 = vmatmul.mubr.f32.gmra.mrb[0].mxu0 %v861
  %v863 = vpop.f32.mrb[0].mxu0
  %v864 = vadd.f32 %v782, %v863
  %v865 = vpop.f32.mrb[0].mxu0
  %866 = vmatprep.mubr.f32.mxu0 0.0
  %v867 = vand.u32 %v533, 4294901760
  %v868 = vsub.f32 %v533, %v867
  %v869 = vand.u32 %v868, 4294901760
  %870 = vmatmul.mubr.f32.gmra.mrb[0].mxu0 %v869
  %v871 = vpop.f32.mrb[0].mxu0
  %v872 = vadd.f32 %v789, %v871
  %v873 = vpop.f32.mrb[0].mxu0
  %874 = vdwg.mxu0
  %875 = vmatprep.subr.mxu0 0.0
  %v876 = vand.u32 %v16, 4294901760
  %v877 = vsub.f32 %v16, %v876
  %v878 = vand.u32 %v877, 4294901760
  %879 = vmatpush1.msra.mxu0 %v878
  %880 = vmatprep.subr.mxu0 0.0
  %v881 = vand.u32 %v17, 4294901760
  %v882 = vsub.f32 %v17, %v881
  %v883 = vand.u32 %v882, 4294901760
  %884 = vmatpush1.msra.mxu0 %v883
  %885 = vmatprep.subr.mxu0 0.0
  %886 = vmatpush1.msra.mxu0 0.0
  %887 = vmatprep.subr.mxu0 0.0
  %888 = vmatpush1.msra.mxu0 0.0
  %889 = vmatprep.subr.mxu0 0.0
  %890 = vmatpush1.msra.mxu0 0.0
  %891 = vmatprep.subr.mxu0 0.0
  %892 = vmatpush1.msra.mxu0 0.0
  %893 = vmatprep.subr.mxu0 0.0
  %894 = vmatpush1.msra.mxu0 0.0
  %895 = vmatprep.subr.mxu0 0.0
  %896 = vmatpush1.msra.mxu0 0.0
  %897 = vmatprep.subr.mxu0 0.0
  %898 = vmatpush1.msra.mxu0 0.0
  %899 = vmatprep.subr.mxu0 0.0
  %900 = vmatpush1.msra.mxu0 0.0
  %901 = vmatprep.subr.mxu0 0.0
  %902 = vmatpush1.msra.mxu0 0.0
  %903 = vmatprep.subr.mxu0 0.0
  %904 = vmatpush1.msra.mxu0 0.0
  %905 = vmatprep.subr.mxu0 0.0
  %906 = vmatpush1.msra.mxu0 0.0
  %907 = vmatprep.subr.mxu0 0.0
  %908 = vmatpush1.msra.mxu0 0.0
  %909 = vmatprep.subr.mxu0 0.0
  %910 = vmatpush1.msra.mxu0 0.0
  %911 = vmatprep.subr.mxu0 0.0
  %912 = vmatpush1.msra.mxu0 0.0
  %913 = vmatprep.subr.mxu0 0.0
  %914 = vmatpush1.msra.mxu0 0.0
  %915 = vmatprep.subr.mxu0 0.0
  %916 = vmatpush1.msra.mxu0 0.0
  %917 = vmatprep.subr.mxu0 0.0
  %918 = vmatpush1.msra.mxu0 0.0
  %919 = vmatprep.subr.mxu0 0.0
  %920 = vmatpush1.msra.mxu0 0.0
  %921 = vmatprep.subr.mxu0 0.0
  %922 = vmatpush1.msra.mxu0 0.0
  %923 = vmatprep.subr.mxu0 0.0
  %924 = vmatpush1.msra.mxu0 0.0
  %925 = vmatprep.subr.mxu0 0.0
  %926 = vmatpush1.msra.mxu0 0.0
  %927 = vmatprep.subr.mxu0 0.0
  %928 = vmatpush1.msra.mxu0 0.0
  %929 = vmatprep.subr.mxu0 0.0
  %930 = vmatpush1.msra.mxu0 0.0
  %931 = vmatprep.subr.mxu0 0.0
  %932 = vmatpush1.msra.mxu0 0.0
  %933 = vmatprep.subr.mxu0 0.0
  %934 = vmatpush1.msra.mxu0 0.0
  %935 = vmatprep.subr.mxu0 0.0
  %936 = vmatpush1.msra.mxu0 0.0
  %937 = vmatprep.subr.mxu0 0.0
  %938 = vmatpush1.msra.mxu0 0.0
  %939 = vmatprep.subr.mxu0 0.0
  %940 = vmatpush1.msra.mxu0 0.0
  %941 = vmatprep.subr.mxu0 0.0
  %942 = vmatpush1.msra.mxu0 0.0
  %943 = vmatprep.subr.mxu0 0.0
  %944 = vmatpush1.msra.mxu0 0.0
  %945 = vmatprep.mubr.f32.mxu0 0.0
  %v946 = vand.u32 %v530, 4294901760
  %947 = vmatmul.mubr.f32.gmra.mrb[0].mxu0 %v946
  %v948 = vpop.f32.mrb[0].mxu0
  %v949 = vadd.f32 %v864, %v948
  %v950 = vpop.f32.mrb[0].mxu0
  %951 = vmatprep.mubr.f32.mxu0 0.0
  %v952 = vand.u32 %v533, 4294901760
  %953 = vmatmul.mubr.f32.gmra.mrb[0].mxu0 %v952
  %v954 = vpop.f32.mrb[0].mxu0
  %v955 = vadd.f32 %v872, %v954
  %v956 = vpop.f32.mrb[0].mxu0
  %957 = vdwg.mxu0
  %958 = vmatprep.subr.mxu0 0.0
  %v959 = vand.u32 %v16, 4294901760
  %960 = vmatpush1.msra.mxu0 %v959
  %961 = vmatprep.subr.mxu0 0.0
  %v962 = vand.u32 %v17, 4294901760
  %963 = vmatpush1.msra.mxu0 %v962
  %964 = vmatprep.subr.mxu0 0.0
  %965 = vmatpush1.msra.mxu0 0.0
  %966 = vmatprep.subr.mxu0 0.0
  %967 = vmatpush1.msra.mxu0 0.0
  %968 = vmatprep.subr.mxu0 0.0
  %969 = vmatpush1.msra.mxu0 0.0
  %970 = vmatprep.subr.mxu0 0.0
  %971 = vmatpush1.msra.mxu0 0.0
  %972 = vmatprep.subr.mxu0 0.0
  %973 = vmatpush1.msra.mxu0 0.0
  %974 = vmatprep.subr.mxu0 0.0
  %975 = vmatpush1.msra.mxu0 0.0
  %976 = vmatprep.subr.mxu0 0.0
  %977 = vmatpush1.msra.mxu0 0.0
  %978 = vmatprep.subr.mxu0 0.0
  %979 = vmatpush1.msra.mxu0 0.0
  %980 = vmatprep.subr.mxu0 0.0
  %981 = vmatpush1.msra.mxu0 0.0
  %982 = vmatprep.subr.mxu0 0.0
  %983 = vmatpush1.msra.mxu0 0.0
  %984 = vmatprep.subr.mxu0 0.0
  %985 = vmatpush1.msra.mxu0 0.0
  %986 = vmatprep.subr.mxu0 0.0
  %987 = vmatpush1.msra.mxu0 0.0
  %988 = vmatprep.subr.mxu0 0.0
  %989 = vmatpush1.msra.mxu0 0.0
  %990 = vmatprep.subr.mxu0 0.0
  %991 = vmatpush1.msra.mxu0 0.0
  %992 = vmatprep.subr.mxu0 0.0
  %993 = vmatpush1.msra.mxu0 0.0
  %994 = vmatprep.subr.mxu0 0.0
  %995 = vmatpush1.msra.mxu0 0.0
  %996 = vmatprep.subr.mxu0 0.0
  %997 = vmatpush1.msra.mxu0 0.0
  %998 = vmatprep.subr.mxu0 0.0
  %999 = vmatpush1.msra.mxu0 0.0
  %1000 = vmatprep.subr.mxu0 0.0
  %1001 = vmatpush1.msra.mxu0 0.0
  %1002 = vmatprep.subr.mxu0 0.0
  %1003 = vmatpush1.msra.mxu0 0.0
  %1004 = vmatprep.subr.mxu0 0.0
  %1005 = vmatpush1.msra.mxu0 0.0
  %1006 = vmatprep.subr.mxu0 0.0
  %1007 = vmatpush1.msra.mxu0 0.0
  %1008 = vmatprep.subr.mxu0 0.0
  %1009 = vmatpush1.msra.mxu0 0.0
  %1010 = vmatprep.subr.mxu0 0.0
  %1011 = vmatpush1.msra.mxu0 0.0
  %1012 = vmatprep.subr.mxu0 0.0
  %1013 = vmatpush1.msra.mxu0 0.0
  %1014 = vmatprep.subr.mxu0 0.0
  %1015 = vmatpush1.msra.mxu0 0.0
  %1016 = vmatprep.subr.mxu0 0.0
  %1017 = vmatpush1.msra.mxu0 0.0
  %1018 = vmatprep.subr.mxu0 0.0
  %1019 = vmatpush1.msra.mxu0 0.0
  %1020 = vmatprep.subr.mxu0 0.0
  %1021 = vmatpush1.msra.mxu0 0.0
  %1022 = vmatprep.subr.mxu0 0.0
  %1023 = vmatpush1.msra.mxu0 0.0
  %1024 = vmatprep.mubr.f32.mxu0 0.0
  %v1025 = vand.u32 %v530, 4294901760
  %1026 = vmatmul.mubr.f32.gmra.mrb[0].mxu0 %v1025
  %v1027 = vpop.f32.mrb[0].mxu0
  %v1028 = vadd.f32 %v949, %v1027
  %v1029 = vpop.f32.mrb[0].mxu0
  %1030 = vmatprep.mubr.f32.mxu0 0.0
  %v1031 = vand.u32 %v533, 4294901760
  %1032 = vmatmul.mubr.f32.gmra.mrb[0].mxu0 %v1031
  %v1033 = vpop.f32.mrb[0].mxu0
  %v1034 = vadd.f32 %v955, %v1033
  %v1035 = vpop.f32.mrb[0].mxu0
  %1036 = vdwg.mxu0
  %v1037 = vsel %vm20, %v1028, -inf
  %v1038 = vsel %vm20, %v1034, -inf
  %v1039 = vmax.f32 %v1037, %v1038
  %1040 = vmax.xlane.f32.xlu0 %v1039
  %v1041 = vpop.xlane.xlu0 %1040
  %v1042 = vrot.slane %v1041, 4
  %v1043 = vmax.f32 %v1041, %v1042
  %v1044 = vrot.slane %v1043, 2
  %v1045 = vmax.f32 %v1043, %v1044
  %v1046 = vrot.slane %v1045, 1
  %v1047 = vmax.f32 %v1045, %v1046
  %s1048 = vtos %v1047
  %v1049 = vsel %vm20, %v1028, inf
  %v1050 = vsel %vm20, %v1034, inf
  %v1051 = vmin.f32 %v1049, %v1050
  %1052 = vmin.xlane.f32.xlu0 %v1051
  %v1053 = vpop.xlane.xlu0 %1052
  %v1054 = vrot.slane %v1053, 4
  %v1055 = vmin.f32 %v1053, %v1054
  %v1056 = vrot.slane %v1055, 2
  %v1057 = vmin.f32 %v1055, %v1056
  %v1058 = vrot.slane %v1057, 1
  %v1059 = vmin.f32 %v1057, %v1058
  %s1060 = vtos %v1059
  %v1061 = vstv %s1060
  %v1062 = vsub.f32 %v1028, %v1061
  %v1063 = vsub.f32 %v1034, %v1061
  %s1064 = ssub.f32 %s1048, %s1060
  %s1065 = sadd.f32 %s1064, 1e-08
  %v1066 = vstv %s1065
  %v1067 = vrcp.pop %v1066
  %s1068 = vtos %v1067
  %v1069 = vstv %s1068
  %v1070 = vmul.f32 %v1062, %v1069
  %v1071 = vmul.f32 %v1063, %v1069
  %v1072 = vmax.f32 %v1070, %v18
  %v1073 = vmax.f32 %v1071, %v19
  %1074 = vst.msk [vmem:[%s3] sm:$0xff] %vm20, %v1072
  %1075 = vst.msk [vmem:[%s3 + $0x8] sm:$0xff] %vm20, %v1073
  %s1076 = scalar_lea.vmem %s0, 16
  %v1077 = vld [vmem:[%s1076] sm:$0xff]
  %v1078 = vld [vmem:[%s1076 + $0x8] sm:$0xff]
  %1079 = vmatprep.subr.mxu0 0.0
  %v1080 = vand.u32 %v1077, 4294901760
  %1081 = vmatpush1.msra.mxu0 %v1080
  %1082 = vmatprep.subr.mxu0 0.0
  %v1083 = vand.u32 %v1078, 4294901760
  %1084 = vmatpush1.msra.mxu0 %v1083
  %1085 = vmatprep.subr.mxu0 0.0
  %1086 = vmatpush1.msra.mxu0 0.0
  %1087 = vmatprep.subr.mxu0 0.0
  %1088 = vmatpush1.msra.mxu0 0.0
  %1089 = vmatprep.subr.mxu0 0.0
  %1090 = vmatpush1.msra.mxu0 0.0
  %1091 = vmatprep.subr.mxu0 0.0
  %1092 = vmatpush1.msra.mxu0 0.0
  %1093 = vmatprep.subr.mxu0 0.0
  %1094 = vmatpush1.msra.mxu0 0.0
  %1095 = vmatprep.subr.mxu0 0.0
  %1096 = vmatpush1.msra.mxu0 0.0
  %1097 = vmatprep.subr.mxu0 0.0
  %1098 = vmatpush1.msra.mxu0 0.0
  %1099 = vmatprep.subr.mxu0 0.0
  %1100 = vmatpush1.msra.mxu0 0.0
  %1101 = vmatprep.subr.mxu0 0.0
  %1102 = vmatpush1.msra.mxu0 0.0
  %1103 = vmatprep.subr.mxu0 0.0
  %1104 = vmatpush1.msra.mxu0 0.0
  %1105 = vmatprep.subr.mxu0 0.0
  %1106 = vmatpush1.msra.mxu0 0.0
  %1107 = vmatprep.subr.mxu0 0.0
  %1108 = vmatpush1.msra.mxu0 0.0
  %1109 = vmatprep.subr.mxu0 0.0
  %1110 = vmatpush1.msra.mxu0 0.0
  %1111 = vmatprep.subr.mxu0 0.0
  %1112 = vmatpush1.msra.mxu0 0.0
  %1113 = vmatprep.subr.mxu0 0.0
  %1114 = vmatpush1.msra.mxu0 0.0
  %1115 = vmatprep.subr.mxu0 0.0
  %1116 = vmatpush1.msra.mxu0 0.0
  %1117 = vmatprep.subr.mxu0 0.0
  %1118 = vmatpush1.msra.mxu0 0.0
  %1119 = vmatprep.subr.mxu0 0.0
  %1120 = vmatpush1.msra.mxu0 0.0
  %1121 = vmatprep.subr.mxu0 0.0
  %1122 = vmatpush1.msra.mxu0 0.0
  %1123 = vmatprep.subr.mxu0 0.0
  %1124 = vmatpush1.msra.mxu0 0.0
  %1125 = vmatprep.subr.mxu0 0.0
  %1126 = vmatpush1.msra.mxu0 0.0
  %1127 = vmatprep.subr.mxu0 0.0
  %1128 = vmatpush1.msra.mxu0 0.0
  %1129 = vmatprep.subr.mxu0 0.0
  %1130 = vmatpush1.msra.mxu0 0.0
  %1131 = vmatprep.subr.mxu0 0.0
  %1132 = vmatpush1.msra.mxu0 0.0
  %1133 = vmatprep.subr.mxu0 0.0
  %1134 = vmatpush1.msra.mxu0 0.0
  %1135 = vmatprep.subr.mxu0 0.0
  %1136 = vmatpush1.msra.mxu0 0.0
  %1137 = vmatprep.subr.mxu0 0.0
  %1138 = vmatpush1.msra.mxu0 0.0
  %1139 = vmatprep.subr.mxu0 0.0
  %1140 = vmatpush1.msra.mxu0 0.0
  %1141 = vmatprep.subr.mxu0 0.0
  %1142 = vmatpush1.msra.mxu0 0.0
  %1143 = vmatprep.subr.mxu0 0.0
  %1144 = vmatpush1.msra.mxu0 0.0
  %1145 = vmatprep.mubr.f32.mxu0 0.0
  %v1146 = vand.u32 %v22, 4294901760
  %v1147 = vsub.f32 %v22, %v1146
  %v1148 = vand.u32 %v1147, 4294901760
  %v1149 = vsub.f32 %v1147, %v1148
  %v1150 = vand.u32 %v1149, 4294901760
  %1151 = vmatmul.mubr.f32.gmra.mrb[0].mxu0 %v1150
  %v1152 = vpop.f32.mrb[0].mxu0
  %v1153 = vadd.f32 0.0, %v1152
  %v1154 = vpop.f32.mrb[0].mxu0
  %1155 = vmatprep.mubr.f32.mxu0 0.0
  %v1156 = vand.u32 %v25, 4294901760
  %v1157 = vsub.f32 %v25, %v1156
  %v1158 = vand.u32 %v1157, 4294901760
  %v1159 = vsub.f32 %v1157, %v1158
  %v1160 = vand.u32 %v1159, 4294901760
  %1161 = vmatmul.mubr.f32.gmra.mrb[0].mxu0 %v1160
  %v1162 = vpop.f32.mrb[0].mxu0
  %v1163 = vadd.f32 0.0, %v1162
  %v1164 = vpop.f32.mrb[0].mxu0
  %1165 = vdwg.mxu0
  %1166 = vmatprep.subr.mxu0 0.0
  %v1167 = vand.u32 %v1077, 4294901760
  %v1168 = vsub.f32 %v1077, %v1167
  %v1169 = vand.u32 %v1168, 4294901760
  %v1170 = vsub.f32 %v1168, %v1169
  %v1171 = vand.u32 %v1170, 4294901760
  %1172 = vmatpush1.msra.mxu0 %v1171
  %1173 = vmatprep.subr.mxu0 0.0
  %v1174 = vand.u32 %v1078, 4294901760
  %v1175 = vsub.f32 %v1078, %v1174
  %v1176 = vand.u32 %v1175, 4294901760
  %v1177 = vsub.f32 %v1175, %v1176
  %v1178 = vand.u32 %v1177, 4294901760
  %1179 = vmatpush1.msra.mxu0 %v1178
  %1180 = vmatprep.subr.mxu0 0.0
  %1181 = vmatpush1.msra.mxu0 0.0
  %1182 = vmatprep.subr.mxu0 0.0
  %1183 = vmatpush1.msra.mxu0 0.0
  %1184 = vmatprep.subr.mxu0 0.0
  %1185 = vmatpush1.msra.mxu0 0.0
  %1186 = vmatprep.subr.mxu0 0.0
  %1187 = vmatpush1.msra.mxu0 0.0
  %1188 = vmatprep.subr.mxu0 0.0
  %1189 = vmatpush1.msra.mxu0 0.0
  %1190 = vmatprep.subr.mxu0 0.0
  %1191 = vmatpush1.msra.mxu0 0.0
  %1192 = vmatprep.subr.mxu0 0.0
  %1193 = vmatpush1.msra.mxu0 0.0
  %1194 = vmatprep.subr.mxu0 0.0
  %1195 = vmatpush1.msra.mxu0 0.0
  %1196 = vmatprep.subr.mxu0 0.0
  %1197 = vmatpush1.msra.mxu0 0.0
  %1198 = vmatprep.subr.mxu0 0.0
  %1199 = vmatpush1.msra.mxu0 0.0
  %1200 = vmatprep.subr.mxu0 0.0
  %1201 = vmatpush1.msra.mxu0 0.0
  %1202 = vmatprep.subr.mxu0 0.0
  %1203 = vmatpush1.msra.mxu0 0.0
  %1204 = vmatprep.subr.mxu0 0.0
  %1205 = vmatpush1.msra.mxu0 0.0
  %1206 = vmatprep.subr.mxu0 0.0
  %1207 = vmatpush1.msra.mxu0 0.0
  %1208 = vmatprep.subr.mxu0 0.0
  %1209 = vmatpush1.msra.mxu0 0.0
  %1210 = vmatprep.subr.mxu0 0.0
  %1211 = vmatpush1.msra.mxu0 0.0
  %1212 = vmatprep.subr.mxu0 0.0
  %1213 = vmatpush1.msra.mxu0 0.0
  %1214 = vmatprep.subr.mxu0 0.0
  %1215 = vmatpush1.msra.mxu0 0.0
  %1216 = vmatprep.subr.mxu0 0.0
  %1217 = vmatpush1.msra.mxu0 0.0
  %1218 = vmatprep.subr.mxu0 0.0
  %1219 = vmatpush1.msra.mxu0 0.0
  %1220 = vmatprep.subr.mxu0 0.0
  %1221 = vmatpush1.msra.mxu0 0.0
  %1222 = vmatprep.subr.mxu0 0.0
  %1223 = vmatpush1.msra.mxu0 0.0
  %1224 = vmatprep.subr.mxu0 0.0
  %1225 = vmatpush1.msra.mxu0 0.0
  %1226 = vmatprep.subr.mxu0 0.0
  %1227 = vmatpush1.msra.mxu0 0.0
  %1228 = vmatprep.subr.mxu0 0.0
  %1229 = vmatpush1.msra.mxu0 0.0
  %1230 = vmatprep.subr.mxu0 0.0
  %1231 = vmatpush1.msra.mxu0 0.0
  %1232 = vmatprep.subr.mxu0 0.0
  %1233 = vmatpush1.msra.mxu0 0.0
  %1234 = vmatprep.subr.mxu0 0.0
  %1235 = vmatpush1.msra.mxu0 0.0
  %1236 = vmatprep.subr.mxu0 0.0
  %1237 = vmatpush1.msra.mxu0 0.0
  %1238 = vmatprep.subr.mxu0 0.0
  %1239 = vmatpush1.msra.mxu0 0.0
  %1240 = vmatprep.mubr.f32.mxu0 0.0
  %v1241 = vand.u32 %v22, 4294901760
  %1242 = vmatmul.mubr.f32.gmra.mrb[0].mxu0 %v1241
  %v1243 = vpop.f32.mrb[0].mxu0
  %v1244 = vadd.f32 %v1153, %v1243
  %v1245 = vpop.f32.mrb[0].mxu0
  %1246 = vmatprep.mubr.f32.mxu0 0.0
  %v1247 = vand.u32 %v25, 4294901760
  %1248 = vmatmul.mubr.f32.gmra.mrb[0].mxu0 %v1247
  %v1249 = vpop.f32.mrb[0].mxu0
  %v1250 = vadd.f32 %v1163, %v1249
  %v1251 = vpop.f32.mrb[0].mxu0
  %1252 = vdwg.mxu0
  %1253 = vmatprep.subr.mxu0 0.0
  %v1254 = vand.u32 %v1077, 4294901760
  %v1255 = vsub.f32 %v1077, %v1254
  %1256 = vmatpush1.msra.mxu0 %v1255
  %1257 = vmatprep.subr.mxu0 0.0
  %v1258 = vand.u32 %v1078, 4294901760
  %v1259 = vsub.f32 %v1078, %v1258
  %1260 = vmatpush1.msra.mxu0 %v1259
  %1261 = vmatprep.subr.mxu0 0.0
  %1262 = vmatpush1.msra.mxu0 0.0
  %1263 = vmatprep.subr.mxu0 0.0
  %1264 = vmatpush1.msra.mxu0 0.0
  %1265 = vmatprep.subr.mxu0 0.0
  %1266 = vmatpush1.msra.mxu0 0.0
  %1267 = vmatprep.subr.mxu0 0.0
  %1268 = vmatpush1.msra.mxu0 0.0
  %1269 = vmatprep.subr.mxu0 0.0
  %1270 = vmatpush1.msra.mxu0 0.0
  %1271 = vmatprep.subr.mxu0 0.0
  %1272 = vmatpush1.msra.mxu0 0.0
  %1273 = vmatprep.subr.mxu0 0.0
  %1274 = vmatpush1.msra.mxu0 0.0
  %1275 = vmatprep.subr.mxu0 0.0
  %1276 = vmatpush1.msra.mxu0 0.0
  %1277 = vmatprep.subr.mxu0 0.0
  %1278 = vmatpush1.msra.mxu0 0.0
  %1279 = vmatprep.subr.mxu0 0.0
  %1280 = vmatpush1.msra.mxu0 0.0
  %1281 = vmatprep.subr.mxu0 0.0
  %1282 = vmatpush1.msra.mxu0 0.0
  %1283 = vmatprep.subr.mxu0 0.0
  %1284 = vmatpush1.msra.mxu0 0.0
  %1285 = vmatprep.subr.mxu0 0.0
  %1286 = vmatpush1.msra.mxu0 0.0
  %1287 = vmatprep.subr.mxu0 0.0
  %1288 = vmatpush1.msra.mxu0 0.0
  %1289 = vmatprep.subr.mxu0 0.0
  %1290 = vmatpush1.msra.mxu0 0.0
  %1291 = vmatprep.subr.mxu0 0.0
  %1292 = vmatpush1.msra.mxu0 0.0
  %1293 = vmatprep.subr.mxu0 0.0
  %1294 = vmatpush1.msra.mxu0 0.0
  %1295 = vmatprep.subr.mxu0 0.0
  %1296 = vmatpush1.msra.mxu0 0.0
  %1297 = vmatprep.subr.mxu0 0.0
  %1298 = vmatpush1.msra.mxu0 0.0
  %1299 = vmatprep.subr.mxu0 0.0
  %1300 = vmatpush1.msra.mxu0 0.0
  %1301 = vmatprep.subr.mxu0 0.0
  %1302 = vmatpush1.msra.mxu0 0.0
  %1303 = vmatprep.subr.mxu0 0.0
  %1304 = vmatpush1.msra.mxu0 0.0
  %1305 = vmatprep.subr.mxu0 0.0
  %1306 = vmatpush1.msra.mxu0 0.0
  %1307 = vmatprep.subr.mxu0 0.0
  %1308 = vmatpush1.msra.mxu0 0.0
  %1309 = vmatprep.subr.mxu0 0.0
  %1310 = vmatpush1.msra.mxu0 0.0
  %1311 = vmatprep.subr.mxu0 0.0
  %1312 = vmatpush1.msra.mxu0 0.0
  %1313 = vmatprep.subr.mxu0 0.0
  %1314 = vmatpush1.msra.mxu0 0.0
  %1315 = vmatprep.subr.mxu0 0.0
  %1316 = vmatpush1.msra.mxu0 0.0
  %1317 = vmatprep.subr.mxu0 0.0
  %1318 = vmatpush1.msra.mxu0 0.0
  %1319 = vmatprep.subr.mxu0 0.0
  %1320 = vmatpush1.msra.mxu0 0.0
  %1321 = vmatprep.mubr.f32.mxu0 0.0
  %v1322 = vand.u32 %v22, 4294901760
  %v1323 = vsub.f32 %v22, %v1322
  %1324 = vmatmul.mubr.f32.gmra.mrb[0].mxu0 %v1323
  %v1325 = vpop.f32.mrb[0].mxu0
  %v1326 = vadd.f32 %v1244, %v1325
  %v1327 = vpop.f32.mrb[0].mxu0
  %1328 = vmatprep.mubr.f32.mxu0 0.0
  %v1329 = vand.u32 %v25, 4294901760
  %v1330 = vsub.f32 %v25, %v1329
  %1331 = vmatmul.mubr.f32.gmra.mrb[0].mxu0 %v1330
  %v1332 = vpop.f32.mrb[0].mxu0
  %v1333 = vadd.f32 %v1250, %v1332
  %v1334 = vpop.f32.mrb[0].mxu0
  %1335 = vdwg.mxu0
  %1336 = vmatprep.subr.mxu0 0.0
  %v1337 = vand.u32 %v1077, 4294901760
  %1338 = vmatpush1.msra.mxu0 %v1337
  %1339 = vmatprep.subr.mxu0 0.0
  %v1340 = vand.u32 %v1078, 4294901760
  %1341 = vmatpush1.msra.mxu0 %v1340
  %1342 = vmatprep.subr.mxu0 0.0
  %1343 = vmatpush1.msra.mxu0 0.0
  %1344 = vmatprep.subr.mxu0 0.0
  %1345 = vmatpush1.msra.mxu0 0.0
  %1346 = vmatprep.subr.mxu0 0.0
  %1347 = vmatpush1.msra.mxu0 0.0
  %1348 = vmatprep.subr.mxu0 0.0
  %1349 = vmatpush1.msra.mxu0 0.0
  %1350 = vmatprep.subr.mxu0 0.0
  %1351 = vmatpush1.msra.mxu0 0.0
  %1352 = vmatprep.subr.mxu0 0.0
  %1353 = vmatpush1.msra.mxu0 0.0
  %1354 = vmatprep.subr.mxu0 0.0
  %1355 = vmatpush1.msra.mxu0 0.0
  %1356 = vmatprep.subr.mxu0 0.0
  %1357 = vmatpush1.msra.mxu0 0.0
  %1358 = vmatprep.subr.mxu0 0.0
  %1359 = vmatpush1.msra.mxu0 0.0
  %1360 = vmatprep.subr.mxu0 0.0
  %1361 = vmatpush1.msra.mxu0 0.0
  %1362 = vmatprep.subr.mxu0 0.0
  %1363 = vmatpush1.msra.mxu0 0.0
  %1364 = vmatprep.subr.mxu0 0.0
  %1365 = vmatpush1.msra.mxu0 0.0
  %1366 = vmatprep.subr.mxu0 0.0
  %1367 = vmatpush1.msra.mxu0 0.0
  %1368 = vmatprep.subr.mxu0 0.0
  %1369 = vmatpush1.msra.mxu0 0.0
  %1370 = vmatprep.subr.mxu0 0.0
  %1371 = vmatpush1.msra.mxu0 0.0
  %1372 = vmatprep.subr.mxu0 0.0
  %1373 = vmatpush1.msra.mxu0 0.0
  %1374 = vmatprep.subr.mxu0 0.0
  %1375 = vmatpush1.msra.mxu0 0.0
  %1376 = vmatprep.subr.mxu0 0.0
  %1377 = vmatpush1.msra.mxu0 0.0
  %1378 = vmatprep.subr.mxu0 0.0
  %1379 = vmatpush1.msra.mxu0 0.0
  %1380 = vmatprep.subr.mxu0 0.0
  %1381 = vmatpush1.msra.mxu0 0.0
  %1382 = vmatprep.subr.mxu0 0.0
  %1383 = vmatpush1.msra.mxu0 0.0
  %1384 = vmatprep.subr.mxu0 0.0
  %1385 = vmatpush1.msra.mxu0 0.0
  %1386 = vmatprep.subr.mxu0 0.0
  %1387 = vmatpush1.msra.mxu0 0.0
  %1388 = vmatprep.subr.mxu0 0.0
  %1389 = vmatpush1.msra.mxu0 0.0
  %1390 = vmatprep.subr.mxu0 0.0
  %1391 = vmatpush1.msra.mxu0 0.0
  %1392 = vmatprep.subr.mxu0 0.0
  %1393 = vmatpush1.msra.mxu0 0.0
  %1394 = vmatprep.subr.mxu0 0.0
  %1395 = vmatpush1.msra.mxu0 0.0
  %1396 = vmatprep.subr.mxu0 0.0
  %1397 = vmatpush1.msra.mxu0 0.0
  %1398 = vmatprep.subr.mxu0 0.0
  %1399 = vmatpush1.msra.mxu0 0.0
  %1400 = vmatprep.subr.mxu0 0.0
  %1401 = vmatpush1.msra.mxu0 0.0
  %1402 = vmatprep.mubr.f32.mxu0 0.0
  %v1403 = vand.u32 %v22, 4294901760
  %v1404 = vsub.f32 %v22, %v1403
  %v1405 = vand.u32 %v1404, 4294901760
  %1406 = vmatmul.mubr.f32.gmra.mrb[0].mxu0 %v1405
  %v1407 = vpop.f32.mrb[0].mxu0
  %v1408 = vadd.f32 %v1326, %v1407
  %v1409 = vpop.f32.mrb[0].mxu0
  %1410 = vmatprep.mubr.f32.mxu0 0.0
  %v1411 = vand.u32 %v25, 4294901760
  %v1412 = vsub.f32 %v25, %v1411
  %v1413 = vand.u32 %v1412, 4294901760
  %1414 = vmatmul.mubr.f32.gmra.mrb[0].mxu0 %v1413
  %v1415 = vpop.f32.mrb[0].mxu0
  %v1416 = vadd.f32 %v1333, %v1415
  %v1417 = vpop.f32.mrb[0].mxu0
  %1418 = vdwg.mxu0
  %1419 = vmatprep.subr.mxu0 0.0
  %v1420 = vand.u32 %v1077, 4294901760
  %v1421 = vsub.f32 %v1077, %v1420
  %v1422 = vand.u32 %v1421, 4294901760
  %1423 = vmatpush1.msra.mxu0 %v1422
  %1424 = vmatprep.subr.mxu0 0.0
  %v1425 = vand.u32 %v1078, 4294901760
  %v1426 = vsub.f32 %v1078, %v1425
  %v1427 = vand.u32 %v1426, 4294901760
  %1428 = vmatpush1.msra.mxu0 %v1427
  %1429 = vmatprep.subr.mxu0 0.0
  %1430 = vmatpush1.msra.mxu0 0.0
  %1431 = vmatprep.subr.mxu0 0.0
  %1432 = vmatpush1.msra.mxu0 0.0
  %1433 = vmatprep.subr.mxu0 0.0
  %1434 = vmatpush1.msra.mxu0 0.0
  %1435 = vmatprep.subr.mxu0 0.0
  %1436 = vmatpush1.msra.mxu0 0.0
  %1437 = vmatprep.subr.mxu0 0.0
  %1438 = vmatpush1.msra.mxu0 0.0
  %1439 = vmatprep.subr.mxu0 0.0
  %1440 = vmatpush1.msra.mxu0 0.0
  %1441 = vmatprep.subr.mxu0 0.0
  %1442 = vmatpush1.msra.mxu0 0.0
  %1443 = vmatprep.subr.mxu0 0.0
  %1444 = vmatpush1.msra.mxu0 0.0
  %1445 = vmatprep.subr.mxu0 0.0
  %1446 = vmatpush1.msra.mxu0 0.0
  %1447 = vmatprep.subr.mxu0 0.0
  %1448 = vmatpush1.msra.mxu0 0.0
  %1449 = vmatprep.subr.mxu0 0.0
  %1450 = vmatpush1.msra.mxu0 0.0
  %1451 = vmatprep.subr.mxu0 0.0
  %1452 = vmatpush1.msra.mxu0 0.0
  %1453 = vmatprep.subr.mxu0 0.0
  %1454 = vmatpush1.msra.mxu0 0.0
  %1455 = vmatprep.subr.mxu0 0.0
  %1456 = vmatpush1.msra.mxu0 0.0
  %1457 = vmatprep.subr.mxu0 0.0
  %1458 = vmatpush1.msra.mxu0 0.0
  %1459 = vmatprep.subr.mxu0 0.0
  %1460 = vmatpush1.msra.mxu0 0.0
  %1461 = vmatprep.subr.mxu0 0.0
  %1462 = vmatpush1.msra.mxu0 0.0
  %1463 = vmatprep.subr.mxu0 0.0
  %1464 = vmatpush1.msra.mxu0 0.0
  %1465 = vmatprep.subr.mxu0 0.0
  %1466 = vmatpush1.msra.mxu0 0.0
  %1467 = vmatprep.subr.mxu0 0.0
  %1468 = vmatpush1.msra.mxu0 0.0
  %1469 = vmatprep.subr.mxu0 0.0
  %1470 = vmatpush1.msra.mxu0 0.0
  %1471 = vmatprep.subr.mxu0 0.0
  %1472 = vmatpush1.msra.mxu0 0.0
  %1473 = vmatprep.subr.mxu0 0.0
  %1474 = vmatpush1.msra.mxu0 0.0
  %1475 = vmatprep.subr.mxu0 0.0
  %1476 = vmatpush1.msra.mxu0 0.0
  %1477 = vmatprep.subr.mxu0 0.0
  %1478 = vmatpush1.msra.mxu0 0.0
  %1479 = vmatprep.subr.mxu0 0.0
  %1480 = vmatpush1.msra.mxu0 0.0
  %1481 = vmatprep.subr.mxu0 0.0
  %1482 = vmatpush1.msra.mxu0 0.0
  %1483 = vmatprep.subr.mxu0 0.0
  %1484 = vmatpush1.msra.mxu0 0.0
  %1485 = vmatprep.subr.mxu0 0.0
  %1486 = vmatpush1.msra.mxu0 0.0
  %1487 = vmatprep.subr.mxu0 0.0
  %1488 = vmatpush1.msra.mxu0 0.0
  %1489 = vmatprep.mubr.f32.mxu0 0.0
  %v1490 = vand.u32 %v22, 4294901760
  %1491 = vmatmul.mubr.f32.gmra.mrb[0].mxu0 %v1490
  %v1492 = vpop.f32.mrb[0].mxu0
  %v1493 = vadd.f32 %v1408, %v1492
  %v1494 = vpop.f32.mrb[0].mxu0
  %1495 = vmatprep.mubr.f32.mxu0 0.0
  %v1496 = vand.u32 %v25, 4294901760
  %1497 = vmatmul.mubr.f32.gmra.mrb[0].mxu0 %v1496
  %v1498 = vpop.f32.mrb[0].mxu0
  %v1499 = vadd.f32 %v1416, %v1498
  %v1500 = vpop.f32.mrb[0].mxu0
  %1501 = vdwg.mxu0
  %1502 = vmatprep.subr.mxu0 0.0
  %v1503 = vand.u32 %v1077, 4294901760
  %1504 = vmatpush1.msra.mxu0 %v1503
  %1505 = vmatprep.subr.mxu0 0.0
  %v1506 = vand.u32 %v1078, 4294901760
  %1507 = vmatpush1.msra.mxu0 %v1506
  %1508 = vmatprep.subr.mxu0 0.0
  %1509 = vmatpush1.msra.mxu0 0.0
  %1510 = vmatprep.subr.mxu0 0.0
  %1511 = vmatpush1.msra.mxu0 0.0
  %1512 = vmatprep.subr.mxu0 0.0
  %1513 = vmatpush1.msra.mxu0 0.0
  %1514 = vmatprep.subr.mxu0 0.0
  %1515 = vmatpush1.msra.mxu0 0.0
  %1516 = vmatprep.subr.mxu0 0.0
  %1517 = vmatpush1.msra.mxu0 0.0
  %1518 = vmatprep.subr.mxu0 0.0
  %1519 = vmatpush1.msra.mxu0 0.0
  %1520 = vmatprep.subr.mxu0 0.0
  %1521 = vmatpush1.msra.mxu0 0.0
  %1522 = vmatprep.subr.mxu0 0.0
  %1523 = vmatpush1.msra.mxu0 0.0
  %1524 = vmatprep.subr.mxu0 0.0
  %1525 = vmatpush1.msra.mxu0 0.0
  %1526 = vmatprep.subr.mxu0 0.0
  %1527 = vmatpush1.msra.mxu0 0.0
  %1528 = vmatprep.subr.mxu0 0.0
  %1529 = vmatpush1.msra.mxu0 0.0
  %1530 = vmatprep.subr.mxu0 0.0
  %1531 = vmatpush1.msra.mxu0 0.0
  %1532 = vmatprep.subr.mxu0 0.0
  %1533 = vmatpush1.msra.mxu0 0.0
  %1534 = vmatprep.subr.mxu0 0.0
  %1535 = vmatpush1.msra.mxu0 0.0
  %1536 = vmatprep.subr.mxu0 0.0
  %1537 = vmatpush1.msra.mxu0 0.0
  %1538 = vmatprep.subr.mxu0 0.0
  %1539 = vmatpush1.msra.mxu0 0.0
  %1540 = vmatprep.subr.mxu0 0.0
  %1541 = vmatpush1.msra.mxu0 0.0
  %1542 = vmatprep.subr.mxu0 0.0
  %1543 = vmatpush1.msra.mxu0 0.0
  %1544 = vmatprep.subr.mxu0 0.0
  %1545 = vmatpush1.msra.mxu0 0.0
  %1546 = vmatprep.subr.mxu0 0.0
  %1547 = vmatpush1.msra.mxu0 0.0
  %1548 = vmatprep.subr.mxu0 0.0
  %1549 = vmatpush1.msra.mxu0 0.0
  %1550 = vmatprep.subr.mxu0 0.0
  %1551 = vmatpush1.msra.mxu0 0.0
  %1552 = vmatprep.subr.mxu0 0.0
  %1553 = vmatpush1.msra.mxu0 0.0
  %1554 = vmatprep.subr.mxu0 0.0
  %1555 = vmatpush1.msra.mxu0 0.0
  %1556 = vmatprep.subr.mxu0 0.0
  %1557 = vmatpush1.msra.mxu0 0.0
  %1558 = vmatprep.subr.mxu0 0.0
  %1559 = vmatpush1.msra.mxu0 0.0
  %1560 = vmatprep.subr.mxu0 0.0
  %1561 = vmatpush1.msra.mxu0 0.0
  %1562 = vmatprep.subr.mxu0 0.0
  %1563 = vmatpush1.msra.mxu0 0.0
  %1564 = vmatprep.subr.mxu0 0.0
  %1565 = vmatpush1.msra.mxu0 0.0
  %1566 = vmatprep.subr.mxu0 0.0
  %1567 = vmatpush1.msra.mxu0 0.0
  %1568 = vmatprep.mubr.f32.mxu0 0.0
  %v1569 = vand.u32 %v22, 4294901760
  %1570 = vmatmul.mubr.f32.gmra.mrb[0].mxu0 %v1569
  %v1571 = vpop.f32.mrb[0].mxu0
  %v1572 = vadd.f32 %v1493, %v1571
  %v1573 = vpop.f32.mrb[0].mxu0
  %1574 = vmatprep.mubr.f32.mxu0 0.0
  %v1575 = vand.u32 %v25, 4294901760
  %1576 = vmatmul.mubr.f32.gmra.mrb[0].mxu0 %v1575
  %v1577 = vpop.f32.mrb[0].mxu0
  %v1578 = vadd.f32 %v1499, %v1577
  %v1579 = vpop.f32.mrb[0].mxu0
  %1580 = vdwg.mxu0
  %v1582 = vsel %vm20, %v1572, 0
  %v1585 = vsel %vm20, %v1578, 0
  %1587 = vmatprep.subr.mxu0 0.0
  %v1588 = vand.u32 %v16, 4294901760
  %1589 = vmatpush1.msra.mxu0 %v1588
  %1590 = vmatprep.subr.mxu0 0.0
  %v1591 = vand.u32 %v17, 4294901760
  %1592 = vmatpush1.msra.mxu0 %v1591
  %1593 = vmatprep.subr.mxu0 0.0
  %1594 = vmatpush1.msra.mxu0 0.0
  %1595 = vmatprep.subr.mxu0 0.0
  %1596 = vmatpush1.msra.mxu0 0.0
  %1597 = vmatprep.subr.mxu0 0.0
  %1598 = vmatpush1.msra.mxu0 0.0
  %1599 = vmatprep.subr.mxu0 0.0
  %1600 = vmatpush1.msra.mxu0 0.0
  %1601 = vmatprep.subr.mxu0 0.0
  %1602 = vmatpush1.msra.mxu0 0.0
  %1603 = vmatprep.subr.mxu0 0.0
  %1604 = vmatpush1.msra.mxu0 0.0
  %1605 = vmatprep.subr.mxu0 0.0
  %1606 = vmatpush1.msra.mxu0 0.0
  %1607 = vmatprep.subr.mxu0 0.0
  %1608 = vmatpush1.msra.mxu0 0.0
  %1609 = vmatprep.subr.mxu0 0.0
  %1610 = vmatpush1.msra.mxu0 0.0
  %1611 = vmatprep.subr.mxu0 0.0
  %1612 = vmatpush1.msra.mxu0 0.0
  %1613 = vmatprep.subr.mxu0 0.0
  %1614 = vmatpush1.msra.mxu0 0.0
  %1615 = vmatprep.subr.mxu0 0.0
  %1616 = vmatpush1.msra.mxu0 0.0
  %1617 = vmatprep.subr.mxu0 0.0
  %1618 = vmatpush1.msra.mxu0 0.0
  %1619 = vmatprep.subr.mxu0 0.0
  %1620 = vmatpush1.msra.mxu0 0.0
  %1621 = vmatprep.subr.mxu0 0.0
  %1622 = vmatpush1.msra.mxu0 0.0
  %1623 = vmatprep.subr.mxu0 0.0
  %1624 = vmatpush1.msra.mxu0 0.0
  %1625 = vmatprep.subr.mxu0 0.0
  %1626 = vmatpush1.msra.mxu0 0.0
  %1627 = vmatprep.subr.mxu0 0.0
  %1628 = vmatpush1.msra.mxu0 0.0
  %1629 = vmatprep.subr.mxu0 0.0
  %1630 = vmatpush1.msra.mxu0 0.0
  %1631 = vmatprep.subr.mxu0 0.0
  %1632 = vmatpush1.msra.mxu0 0.0
  %1633 = vmatprep.subr.mxu0 0.0
  %1634 = vmatpush1.msra.mxu0 0.0
  %1635 = vmatprep.subr.mxu0 0.0
  %1636 = vmatpush1.msra.mxu0 0.0
  %1637 = vmatprep.subr.mxu0 0.0
  %1638 = vmatpush1.msra.mxu0 0.0
  %1639 = vmatprep.subr.mxu0 0.0
  %1640 = vmatpush1.msra.mxu0 0.0
  %1641 = vmatprep.subr.mxu0 0.0
  %1642 = vmatpush1.msra.mxu0 0.0
  %1643 = vmatprep.subr.mxu0 0.0
  %1644 = vmatpush1.msra.mxu0 0.0
  %1645 = vmatprep.subr.mxu0 0.0
  %1646 = vmatpush1.msra.mxu0 0.0
  %1647 = vmatprep.subr.mxu0 0.0
  %1648 = vmatpush1.msra.mxu0 0.0
  %1649 = vmatprep.subr.mxu0 0.0
  %1650 = vmatpush1.msra.mxu0 0.0
  %1651 = vmatprep.subr.mxu0 0.0
  %1652 = vmatpush1.msra.mxu0 0.0
  %1653 = vmatprep.mubr.f32.mxu0 0.0
  %v1654 = vand.u32 %v1582, 4294901760
  %v1655 = vsub.f32 %v1582, %v1654
  %v1656 = vand.u32 %v1655, 4294901760
  %v1657 = vsub.f32 %v1655, %v1656
  %v1658 = vand.u32 %v1657, 4294901760
  %1659 = vmatmul.mubr.f32.gmra.mrb[0].mxu0 %v1658
  %v1660 = vpop.f32.mrb[0].mxu0
  %v1661 = vadd.f32 0.0, %v1660
  %v1662 = vpop.f32.mrb[0].mxu0
  %1663 = vmatprep.mubr.f32.mxu0 0.0
  %v1664 = vand.u32 %v1585, 4294901760
  %v1665 = vsub.f32 %v1585, %v1664
  %v1666 = vand.u32 %v1665, 4294901760
  %v1667 = vsub.f32 %v1665, %v1666
  %v1668 = vand.u32 %v1667, 4294901760
  %1669 = vmatmul.mubr.f32.gmra.mrb[0].mxu0 %v1668
  %v1670 = vpop.f32.mrb[0].mxu0
  %v1671 = vadd.f32 0.0, %v1670
  %v1672 = vpop.f32.mrb[0].mxu0
  %1673 = vdwg.mxu0
  %1674 = vmatprep.subr.mxu0 0.0
  %v1675 = vand.u32 %v16, 4294901760
  %v1676 = vsub.f32 %v16, %v1675
  %v1677 = vand.u32 %v1676, 4294901760
  %v1678 = vsub.f32 %v1676, %v1677
  %v1679 = vand.u32 %v1678, 4294901760
  %1680 = vmatpush1.msra.mxu0 %v1679
  %1681 = vmatprep.subr.mxu0 0.0
  %v1682 = vand.u32 %v17, 4294901760
  %v1683 = vsub.f32 %v17, %v1682
  %v1684 = vand.u32 %v1683, 4294901760
  %v1685 = vsub.f32 %v1683, %v1684
  %v1686 = vand.u32 %v1685, 4294901760
  %1687 = vmatpush1.msra.mxu0 %v1686
  %1688 = vmatprep.subr.mxu0 0.0
  %1689 = vmatpush1.msra.mxu0 0.0
  %1690 = vmatprep.subr.mxu0 0.0
  %1691 = vmatpush1.msra.mxu0 0.0
  %1692 = vmatprep.subr.mxu0 0.0
  %1693 = vmatpush1.msra.mxu0 0.0
  %1694 = vmatprep.subr.mxu0 0.0
  %1695 = vmatpush1.msra.mxu0 0.0
  %1696 = vmatprep.subr.mxu0 0.0
  %1697 = vmatpush1.msra.mxu0 0.0
  %1698 = vmatprep.subr.mxu0 0.0
  %1699 = vmatpush1.msra.mxu0 0.0
  %1700 = vmatprep.subr.mxu0 0.0
  %1701 = vmatpush1.msra.mxu0 0.0
  %1702 = vmatprep.subr.mxu0 0.0
  %1703 = vmatpush1.msra.mxu0 0.0
  %1704 = vmatprep.subr.mxu0 0.0
  %1705 = vmatpush1.msra.mxu0 0.0
  %1706 = vmatprep.subr.mxu0 0.0
  %1707 = vmatpush1.msra.mxu0 0.0
  %1708 = vmatprep.subr.mxu0 0.0
  %1709 = vmatpush1.msra.mxu0 0.0
  %1710 = vmatprep.subr.mxu0 0.0
  %1711 = vmatpush1.msra.mxu0 0.0
  %1712 = vmatprep.subr.mxu0 0.0
  %1713 = vmatpush1.msra.mxu0 0.0
  %1714 = vmatprep.subr.mxu0 0.0
  %1715 = vmatpush1.msra.mxu0 0.0
  %1716 = vmatprep.subr.mxu0 0.0
  %1717 = vmatpush1.msra.mxu0 0.0
  %1718 = vmatprep.subr.mxu0 0.0
  %1719 = vmatpush1.msra.mxu0 0.0
  %1720 = vmatprep.subr.mxu0 0.0
  %1721 = vmatpush1.msra.mxu0 0.0
  %1722 = vmatprep.subr.mxu0 0.0
  %1723 = vmatpush1.msra.mxu0 0.0
  %1724 = vmatprep.subr.mxu0 0.0
  %1725 = vmatpush1.msra.mxu0 0.0
  %1726 = vmatprep.subr.mxu0 0.0
  %1727 = vmatpush1.msra.mxu0 0.0
  %1728 = vmatprep.subr.mxu0 0.0
  %1729 = vmatpush1.msra.mxu0 0.0
  %1730 = vmatprep.subr.mxu0 0.0
  %1731 = vmatpush1.msra.mxu0 0.0
  %1732 = vmatprep.subr.mxu0 0.0
  %1733 = vmatpush1.msra.mxu0 0.0
  %1734 = vmatprep.subr.mxu0 0.0
  %1735 = vmatpush1.msra.mxu0 0.0
  %1736 = vmatprep.subr.mxu0 0.0
  %1737 = vmatpush1.msra.mxu0 0.0
  %1738 = vmatprep.subr.mxu0 0.0
  %1739 = vmatpush1.msra.mxu0 0.0
  %1740 = vmatprep.subr.mxu0 0.0
  %1741 = vmatpush1.msra.mxu0 0.0
  %1742 = vmatprep.subr.mxu0 0.0
  %1743 = vmatpush1.msra.mxu0 0.0
  %1744 = vmatprep.subr.mxu0 0.0
  %1745 = vmatpush1.msra.mxu0 0.0
  %1746 = vmatprep.subr.mxu0 0.0
  %1747 = vmatpush1.msra.mxu0 0.0
  %1748 = vmatprep.mubr.f32.mxu0 0.0
  %v1749 = vand.u32 %v1582, 4294901760
  %1750 = vmatmul.mubr.f32.gmra.mrb[0].mxu0 %v1749
  %v1751 = vpop.f32.mrb[0].mxu0
  %v1752 = vadd.f32 %v1661, %v1751
  %v1753 = vpop.f32.mrb[0].mxu0
  %1754 = vmatprep.mubr.f32.mxu0 0.0
  %v1755 = vand.u32 %v1585, 4294901760
  %1756 = vmatmul.mubr.f32.gmra.mrb[0].mxu0 %v1755
  %v1757 = vpop.f32.mrb[0].mxu0
  %v1758 = vadd.f32 %v1671, %v1757
  %v1759 = vpop.f32.mrb[0].mxu0
  %1760 = vdwg.mxu0
  %1761 = vmatprep.subr.mxu0 0.0
  %v1762 = vand.u32 %v16, 4294901760
  %v1763 = vsub.f32 %v16, %v1762
  %1764 = vmatpush1.msra.mxu0 %v1763
  %1765 = vmatprep.subr.mxu0 0.0
  %v1766 = vand.u32 %v17, 4294901760
  %v1767 = vsub.f32 %v17, %v1766
  %1768 = vmatpush1.msra.mxu0 %v1767
  %1769 = vmatprep.subr.mxu0 0.0
  %1770 = vmatpush1.msra.mxu0 0.0
  %1771 = vmatprep.subr.mxu0 0.0
  %1772 = vmatpush1.msra.mxu0 0.0
  %1773 = vmatprep.subr.mxu0 0.0
  %1774 = vmatpush1.msra.mxu0 0.0
  %1775 = vmatprep.subr.mxu0 0.0
  %1776 = vmatpush1.msra.mxu0 0.0
  %1777 = vmatprep.subr.mxu0 0.0
  %1778 = vmatpush1.msra.mxu0 0.0
  %1779 = vmatprep.subr.mxu0 0.0
  %1780 = vmatpush1.msra.mxu0 0.0
  %1781 = vmatprep.subr.mxu0 0.0
  %1782 = vmatpush1.msra.mxu0 0.0
  %1783 = vmatprep.subr.mxu0 0.0
  %1784 = vmatpush1.msra.mxu0 0.0
  %1785 = vmatprep.subr.mxu0 0.0
  %1786 = vmatpush1.msra.mxu0 0.0
  %1787 = vmatprep.subr.mxu0 0.0
  %1788 = vmatpush1.msra.mxu0 0.0
  %1789 = vmatprep.subr.mxu0 0.0
  %1790 = vmatpush1.msra.mxu0 0.0
  %1791 = vmatprep.subr.mxu0 0.0
  %1792 = vmatpush1.msra.mxu0 0.0
  %1793 = vmatprep.subr.mxu0 0.0
  %1794 = vmatpush1.msra.mxu0 0.0
  %1795 = vmatprep.subr.mxu0 0.0
  %1796 = vmatpush1.msra.mxu0 0.0
  %1797 = vmatprep.subr.mxu0 0.0
  %1798 = vmatpush1.msra.mxu0 0.0
  %1799 = vmatprep.subr.mxu0 0.0
  %1800 = vmatpush1.msra.mxu0 0.0
  %1801 = vmatprep.subr.mxu0 0.0
  %1802 = vmatpush1.msra.mxu0 0.0
  %1803 = vmatprep.subr.mxu0 0.0
  %1804 = vmatpush1.msra.mxu0 0.0
  %1805 = vmatprep.subr.mxu0 0.0
  %1806 = vmatpush1.msra.mxu0 0.0
  %1807 = vmatprep.subr.mxu0 0.0
  %1808 = vmatpush1.msra.mxu0 0.0
  %1809 = vmatprep.subr.mxu0 0.0
  %1810 = vmatpush1.msra.mxu0 0.0
  %1811 = vmatprep.subr.mxu0 0.0
  %1812 = vmatpush1.msra.mxu0 0.0
  %1813 = vmatprep.subr.mxu0 0.0
  %1814 = vmatpush1.msra.mxu0 0.0
  %1815 = vmatprep.subr.mxu0 0.0
  %1816 = vmatpush1.msra.mxu0 0.0
  %1817 = vmatprep.subr.mxu0 0.0
  %1818 = vmatpush1.msra.mxu0 0.0
  %1819 = vmatprep.subr.mxu0 0.0
  %1820 = vmatpush1.msra.mxu0 0.0
  %1821 = vmatprep.subr.mxu0 0.0
  %1822 = vmatpush1.msra.mxu0 0.0
  %1823 = vmatprep.subr.mxu0 0.0
  %1824 = vmatpush1.msra.mxu0 0.0
  %1825 = vmatprep.subr.mxu0 0.0
  %1826 = vmatpush1.msra.mxu0 0.0
  %1827 = vmatprep.subr.mxu0 0.0
  %1828 = vmatpush1.msra.mxu0 0.0
  %1829 = vmatprep.mubr.f32.mxu0 0.0
  %v1830 = vand.u32 %v1582, 4294901760
  %v1831 = vsub.f32 %v1582, %v1830
  %1832 = vmatmul.mubr.f32.gmra.mrb[0].mxu0 %v1831
  %v1833 = vpop.f32.mrb[0].mxu0
  %v1834 = vadd.f32 %v1752, %v1833
  %v1835 = vpop.f32.mrb[0].mxu0
  %1836 = vmatprep.mubr.f32.mxu0 0.0
  %v1837 = vand.u32 %v1585, 4294901760
  %v1838 = vsub.f32 %v1585, %v1837
  %1839 = vmatmul.mubr.f32.gmra.mrb[0].mxu0 %v1838
  %v1840 = vpop.f32.mrb[0].mxu0
  %v1841 = vadd.f32 %v1758, %v1840
  %v1842 = vpop.f32.mrb[0].mxu0
  %1843 = vdwg.mxu0
  %1844 = vmatprep.subr.mxu0 0.0
  %v1845 = vand.u32 %v16, 4294901760
  %1846 = vmatpush1.msra.mxu0 %v1845
  %1847 = vmatprep.subr.mxu0 0.0
  %v1848 = vand.u32 %v17, 4294901760
  %1849 = vmatpush1.msra.mxu0 %v1848
  %1850 = vmatprep.subr.mxu0 0.0
  %1851 = vmatpush1.msra.mxu0 0.0
  %1852 = vmatprep.subr.mxu0 0.0
  %1853 = vmatpush1.msra.mxu0 0.0
  %1854 = vmatprep.subr.mxu0 0.0
  %1855 = vmatpush1.msra.mxu0 0.0
  %1856 = vmatprep.subr.mxu0 0.0
  %1857 = vmatpush1.msra.mxu0 0.0
  %1858 = vmatprep.subr.mxu0 0.0
  %1859 = vmatpush1.msra.mxu0 0.0
  %1860 = vmatprep.subr.mxu0 0.0
  %1861 = vmatpush1.msra.mxu0 0.0
  %1862 = vmatprep.subr.mxu0 0.0
  %1863 = vmatpush1.msra.mxu0 0.0
  %1864 = vmatprep.subr.mxu0 0.0
  %1865 = vmatpush1.msra.mxu0 0.0
  %1866 = vmatprep.subr.mxu0 0.0
  %1867 = vmatpush1.msra.mxu0 0.0
  %1868 = vmatprep.subr.mxu0 0.0
  %1869 = vmatpush1.msra.mxu0 0.0
  %1870 = vmatprep.subr.mxu0 0.0
  %1871 = vmatpush1.msra.mxu0 0.0
  %1872 = vmatprep.subr.mxu0 0.0
  %1873 = vmatpush1.msra.mxu0 0.0
  %1874 = vmatprep.subr.mxu0 0.0
  %1875 = vmatpush1.msra.mxu0 0.0
  %1876 = vmatprep.subr.mxu0 0.0
  %1877 = vmatpush1.msra.mxu0 0.0
  %1878 = vmatprep.subr.mxu0 0.0
  %1879 = vmatpush1.msra.mxu0 0.0
  %1880 = vmatprep.subr.mxu0 0.0
  %1881 = vmatpush1.msra.mxu0 0.0
  %1882 = vmatprep.subr.mxu0 0.0
  %1883 = vmatpush1.msra.mxu0 0.0
  %1884 = vmatprep.subr.mxu0 0.0
  %1885 = vmatpush1.msra.mxu0 0.0
  %1886 = vmatprep.subr.mxu0 0.0
  %1887 = vmatpush1.msra.mxu0 0.0
  %1888 = vmatprep.subr.mxu0 0.0
  %1889 = vmatpush1.msra.mxu0 0.0
  %1890 = vmatprep.subr.mxu0 0.0
  %1891 = vmatpush1.msra.mxu0 0.0
  %1892 = vmatprep.subr.mxu0 0.0
  %1893 = vmatpush1.msra.mxu0 0.0
  %1894 = vmatprep.subr.mxu0 0.0
  %1895 = vmatpush1.msra.mxu0 0.0
  %1896 = vmatprep.subr.mxu0 0.0
  %1897 = vmatpush1.msra.mxu0 0.0
  %1898 = vmatprep.subr.mxu0 0.0
  %1899 = vmatpush1.msra.mxu0 0.0
  %1900 = vmatprep.subr.mxu0 0.0
  %1901 = vmatpush1.msra.mxu0 0.0
  %1902 = vmatprep.subr.mxu0 0.0
  %1903 = vmatpush1.msra.mxu0 0.0
  %1904 = vmatprep.subr.mxu0 0.0
  %1905 = vmatpush1.msra.mxu0 0.0
  %1906 = vmatprep.subr.mxu0 0.0
  %1907 = vmatpush1.msra.mxu0 0.0
  %1908 = vmatprep.subr.mxu0 0.0
  %1909 = vmatpush1.msra.mxu0 0.0
  %1910 = vmatprep.mubr.f32.mxu0 0.0
  %v1911 = vand.u32 %v1582, 4294901760
  %v1912 = vsub.f32 %v1582, %v1911
  %v1913 = vand.u32 %v1912, 4294901760
  %1914 = vmatmul.mubr.f32.gmra.mrb[0].mxu0 %v1913
  %v1915 = vpop.f32.mrb[0].mxu0
  %v1916 = vadd.f32 %v1834, %v1915
  %v1917 = vpop.f32.mrb[0].mxu0
  %1918 = vmatprep.mubr.f32.mxu0 0.0
  %v1919 = vand.u32 %v1585, 4294901760
  %v1920 = vsub.f32 %v1585, %v1919
  %v1921 = vand.u32 %v1920, 4294901760
  %1922 = vmatmul.mubr.f32.gmra.mrb[0].mxu0 %v1921
  %v1923 = vpop.f32.mrb[0].mxu0
  %v1924 = vadd.f32 %v1841, %v1923
  %v1925 = vpop.f32.mrb[0].mxu0
  %1926 = vdwg.mxu0
  %1927 = vmatprep.subr.mxu0 0.0
  %v1928 = vand.u32 %v16, 4294901760
  %v1929 = vsub.f32 %v16, %v1928
  %v1930 = vand.u32 %v1929, 4294901760
  %1931 = vmatpush1.msra.mxu0 %v1930
  %1932 = vmatprep.subr.mxu0 0.0
  %v1933 = vand.u32 %v17, 4294901760
  %v1934 = vsub.f32 %v17, %v1933
  %v1935 = vand.u32 %v1934, 4294901760
  %1936 = vmatpush1.msra.mxu0 %v1935
  %1937 = vmatprep.subr.mxu0 0.0
  %1938 = vmatpush1.msra.mxu0 0.0
  %1939 = vmatprep.subr.mxu0 0.0
  %1940 = vmatpush1.msra.mxu0 0.0
  %1941 = vmatprep.subr.mxu0 0.0
  %1942 = vmatpush1.msra.mxu0 0.0
  %1943 = vmatprep.subr.mxu0 0.0
  %1944 = vmatpush1.msra.mxu0 0.0
  %1945 = vmatprep.subr.mxu0 0.0
  %1946 = vmatpush1.msra.mxu0 0.0
  %1947 = vmatprep.subr.mxu0 0.0
  %1948 = vmatpush1.msra.mxu0 0.0
  %1949 = vmatprep.subr.mxu0 0.0
  %1950 = vmatpush1.msra.mxu0 0.0
  %1951 = vmatprep.subr.mxu0 0.0
  %1952 = vmatpush1.msra.mxu0 0.0
  %1953 = vmatprep.subr.mxu0 0.0
  %1954 = vmatpush1.msra.mxu0 0.0
  %1955 = vmatprep.subr.mxu0 0.0
  %1956 = vmatpush1.msra.mxu0 0.0
  %1957 = vmatprep.subr.mxu0 0.0
  %1958 = vmatpush1.msra.mxu0 0.0
  %1959 = vmatprep.subr.mxu0 0.0
  %1960 = vmatpush1.msra.mxu0 0.0
  %1961 = vmatprep.subr.mxu0 0.0
  %1962 = vmatpush1.msra.mxu0 0.0
  %1963 = vmatprep.subr.mxu0 0.0
  %1964 = vmatpush1.msra.mxu0 0.0
  %1965 = vmatprep.subr.mxu0 0.0
  %1966 = vmatpush1.msra.mxu0 0.0
  %1967 = vmatprep.subr.mxu0 0.0
  %1968 = vmatpush1.msra.mxu0 0.0
  %1969 = vmatprep.subr.mxu0 0.0
  %1970 = vmatpush1.msra.mxu0 0.0
  %1971 = vmatprep.subr.mxu0 0.0
  %1972 = vmatpush1.msra.mxu0 0.0
  %1973 = vmatprep.subr.mxu0 0.0
  %1974 = vmatpush1.msra.mxu0 0.0
  %1975 = vmatprep.subr.mxu0 0.0
  %1976 = vmatpush1.msra.mxu0 0.0
  %1977 = vmatprep.subr.mxu0 0.0
  %1978 = vmatpush1.msra.mxu0 0.0
  %1979 = vmatprep.subr.mxu0 0.0
  %1980 = vmatpush1.msra.mxu0 0.0
  %1981 = vmatprep.subr.mxu0 0.0
  %1982 = vmatpush1.msra.mxu0 0.0
  %1983 = vmatprep.subr.mxu0 0.0
  %1984 = vmatpush1.msra.mxu0 0.0
  %1985 = vmatprep.subr.mxu0 0.0
  %1986 = vmatpush1.msra.mxu0 0.0
  %1987 = vmatprep.subr.mxu0 0.0
  %1988 = vmatpush1.msra.mxu0 0.0
  %1989 = vmatprep.subr.mxu0 0.0
  %1990 = vmatpush1.msra.mxu0 0.0
  %1991 = vmatprep.subr.mxu0 0.0
  %1992 = vmatpush1.msra.mxu0 0.0
  %1993 = vmatprep.subr.mxu0 0.0
  %1994 = vmatpush1.msra.mxu0 0.0
  %1995 = vmatprep.subr.mxu0 0.0
  %1996 = vmatpush1.msra.mxu0 0.0
  %1997 = vmatprep.mubr.f32.mxu0 0.0
  %v1998 = vand.u32 %v1582, 4294901760
  %1999 = vmatmul.mubr.f32.gmra.mrb[0].mxu0 %v1998
  %v2000 = vpop.f32.mrb[0].mxu0
  %v2001 = vadd.f32 %v1916, %v2000
  %v2002 = vpop.f32.mrb[0].mxu0
  %2003 = vmatprep.mubr.f32.mxu0 0.0
  %v2004 = vand.u32 %v1585, 4294901760
  %2005 = vmatmul.mubr.f32.gmra.mrb[0].mxu0 %v2004
  %v2006 = vpop.f32.mrb[0].mxu0
  %v2007 = vadd.f32 %v1924, %v2006
  %v2008 = vpop.f32.mrb[0].mxu0
  %2009 = vdwg.mxu0
  %2010 = vmatprep.subr.mxu0 0.0
  %v2011 = vand.u32 %v16, 4294901760
  %2012 = vmatpush1.msra.mxu0 %v2011
  %2013 = vmatprep.subr.mxu0 0.0
  %v2014 = vand.u32 %v17, 4294901760
  %2015 = vmatpush1.msra.mxu0 %v2014
  %2016 = vmatprep.subr.mxu0 0.0
  %2017 = vmatpush1.msra.mxu0 0.0
  %2018 = vmatprep.subr.mxu0 0.0
  %2019 = vmatpush1.msra.mxu0 0.0
  %2020 = vmatprep.subr.mxu0 0.0
  %2021 = vmatpush1.msra.mxu0 0.0
  %2022 = vmatprep.subr.mxu0 0.0
  %2023 = vmatpush1.msra.mxu0 0.0
  %2024 = vmatprep.subr.mxu0 0.0
  %2025 = vmatpush1.msra.mxu0 0.0
  %2026 = vmatprep.subr.mxu0 0.0
  %2027 = vmatpush1.msra.mxu0 0.0
  %2028 = vmatprep.subr.mxu0 0.0
  %2029 = vmatpush1.msra.mxu0 0.0
  %2030 = vmatprep.subr.mxu0 0.0
  %2031 = vmatpush1.msra.mxu0 0.0
  %2032 = vmatprep.subr.mxu0 0.0
  %2033 = vmatpush1.msra.mxu0 0.0
  %2034 = vmatprep.subr.mxu0 0.0
  %2035 = vmatpush1.msra.mxu0 0.0
  %2036 = vmatprep.subr.mxu0 0.0
  %2037 = vmatpush1.msra.mxu0 0.0
  %2038 = vmatprep.subr.mxu0 0.0
  %2039 = vmatpush1.msra.mxu0 0.0
  %2040 = vmatprep.subr.mxu0 0.0
  %2041 = vmatpush1.msra.mxu0 0.0
  %2042 = vmatprep.subr.mxu0 0.0
  %2043 = vmatpush1.msra.mxu0 0.0
  %2044 = vmatprep.subr.mxu0 0.0
  %2045 = vmatpush1.msra.mxu0 0.0
  %2046 = vmatprep.subr.mxu0 0.0
  %2047 = vmatpush1.msra.mxu0 0.0
  %2048 = vmatprep.subr.mxu0 0.0
  %2049 = vmatpush1.msra.mxu0 0.0
  %2050 = vmatprep.subr.mxu0 0.0
  %2051 = vmatpush1.msra.mxu0 0.0
  %2052 = vmatprep.subr.mxu0 0.0
  %2053 = vmatpush1.msra.mxu0 0.0
  %2054 = vmatprep.subr.mxu0 0.0
  %2055 = vmatpush1.msra.mxu0 0.0
  %2056 = vmatprep.subr.mxu0 0.0
  %2057 = vmatpush1.msra.mxu0 0.0
  %2058 = vmatprep.subr.mxu0 0.0
  %2059 = vmatpush1.msra.mxu0 0.0
  %2060 = vmatprep.subr.mxu0 0.0
  %2061 = vmatpush1.msra.mxu0 0.0
  %2062 = vmatprep.subr.mxu0 0.0
  %2063 = vmatpush1.msra.mxu0 0.0
  %2064 = vmatprep.subr.mxu0 0.0
  %2065 = vmatpush1.msra.mxu0 0.0
  %2066 = vmatprep.subr.mxu0 0.0
  %2067 = vmatpush1.msra.mxu0 0.0
  %2068 = vmatprep.subr.mxu0 0.0
  %2069 = vmatpush1.msra.mxu0 0.0
  %2070 = vmatprep.subr.mxu0 0.0
  %2071 = vmatpush1.msra.mxu0 0.0
  %2072 = vmatprep.subr.mxu0 0.0
  %2073 = vmatpush1.msra.mxu0 0.0
  %2074 = vmatprep.subr.mxu0 0.0
  %2075 = vmatpush1.msra.mxu0 0.0
  %2076 = vmatprep.mubr.f32.mxu0 0.0
  %v2077 = vand.u32 %v1582, 4294901760
  %2078 = vmatmul.mubr.f32.gmra.mrb[0].mxu0 %v2077
  %v2079 = vpop.f32.mrb[0].mxu0
  %v2080 = vadd.f32 %v2001, %v2079
  %v2081 = vpop.f32.mrb[0].mxu0
  %2082 = vmatprep.mubr.f32.mxu0 0.0
  %v2083 = vand.u32 %v1585, 4294901760
  %2084 = vmatmul.mubr.f32.gmra.mrb[0].mxu0 %v2083
  %v2085 = vpop.f32.mrb[0].mxu0
  %v2086 = vadd.f32 %v2007, %v2085
  %v2087 = vpop.f32.mrb[0].mxu0
  %2088 = vdwg.mxu0
  %v2089 = vsel %vm20, %v2080, -inf
  %v2090 = vsel %vm20, %v2086, -inf
  %v2091 = vmax.f32 %v2089, %v2090
  %2092 = vmax.xlane.f32.xlu0 %v2091
  %v2093 = vpop.xlane.xlu0 %2092
  %v2094 = vrot.slane %v2093, 4
  %v2095 = vmax.f32 %v2093, %v2094
  %v2096 = vrot.slane %v2095, 2
  %v2097 = vmax.f32 %v2095, %v2096
  %v2098 = vrot.slane %v2097, 1
  %v2099 = vmax.f32 %v2097, %v2098
  %s2100 = vtos %v2099
  %v2101 = vsel %vm20, %v2080, inf
  %v2102 = vsel %vm20, %v2086, inf
  %v2103 = vmin.f32 %v2101, %v2102
  %2104 = vmin.xlane.f32.xlu0 %v2103
  %v2105 = vpop.xlane.xlu0 %2104
  %v2106 = vrot.slane %v2105, 4
  %v2107 = vmin.f32 %v2105, %v2106
  %v2108 = vrot.slane %v2107, 2
  %v2109 = vmin.f32 %v2107, %v2108
  %v2110 = vrot.slane %v2109, 1
  %v2111 = vmin.f32 %v2109, %v2110
  %s2112 = vtos %v2111
  %v2113 = vstv %s2112
  %v2114 = vsub.f32 %v2080, %v2113
  %v2115 = vsub.f32 %v2086, %v2113
  %s2116 = ssub.f32 %s2100, %s2112
  %s2117 = sadd.f32 %s2116, 1e-08
  %v2118 = vstv %s2117
  %v2119 = vrcp.pop %v2118
  %s2120 = vtos %v2119
  %v2121 = vstv %s2120
  %v2122 = vmul.f32 %v2114, %v2121
  %v2123 = vmul.f32 %v2115, %v2121
  %v2124 = vmax.f32 %v2122, %v1077
  %v2125 = vmax.f32 %v2123, %v1078
  %s2126 = scalar_lea.vmem %s3, 16
  %2127 = vst.msk [vmem:[%s2126] sm:$0xff] %vm20, %v2124
  %2128 = vst.msk [vmem:[%s2126 + $0x8] sm:$0xff] %vm20, %v2125
  // Predicated region
  $region14: #{ham_forward.2} parent=0 // pred_check
    _
  $region15: #{ham_forward.2} parent=0 // pred_check_branch
    %2130 = sbr.rel (0) target = $region17
  $region16: #{ham_forward.2} parent=0 // pred_region
    _
  $region17: #{ham_forward.2} parent=0 // pred_fallthru
    _
  // Predicated region
  $region18: #{ham_forward.2} parent=0 // pred_check
    _
  $region19: #{ham_forward.2} parent=0 // pred_check_branch
    %2132 = sbr.rel (0) target = $region21
  $region20: #{ham_forward.2} parent=0 // pred_region
    _
  $region21: #{ham_forward.2} parent=0 // pred_fallthru
    _

</llo_original>
